<compile_context>
chip_gen: v5e
topology: v5e:2x2
jax: 0.10.0
libtpu: 0.0.40
codegen_flags: <defaults>
</compile_context>

<pallas_src>
import functools

import jax
import jax.numpy as jnp
from jax.experimental import pallas as pl
from jax.experimental.pallas import tpu as pltpu


# ---------------------------------------------------------------------------
# Kernels
# ---------------------------------------------------------------------------

def _msa_kernel_batched(x_ref, w_ref, b_ref, o_ref, *,
                        n_heads, d_head, d, seq, block_b, compute_dtype):
    """Heads-batched MSA kernel (primary path).

    x_ref: (block_b, S, D)  w_ref: (D, 3D)  b_ref: (1, 3D)
    o_ref: (block_b, S, n_heads, d_head)
    """
    f32 = jnp.float32
    m = block_b * seq

    # (block_b, S, D) -> (M, D): leading-dim merge, free.
    x2 = x_ref[...].reshape(m, d).astype(compute_dtype)

    # Fused QKV projection: one (default bf16) MXU matmul, f32 accumulation.
    # The 1/sqrt(d_head) softmax scale is already folded into the Q columns.
    qkv = jnp.dot(x2, w_ref[...], preferred_element_type=f32) + b_ref[...]

    # Single relayout to a heads-batched layout (replaces the per-head lane
    # slices and the trailing concat of the previous version):
    #   (M, 3D) -> (block_b, S, 3H, dh) -> (3H, block_b, S, dh) -> (3, H*B, S, dh)
    qkv = qkv.reshape(block_b, seq, 3 * n_heads, d_head)
    qkv = jnp.transpose(qkv, (2, 0, 1, 3))
    qkv = qkv.reshape(3, n_heads * block_b, seq, d_head)     # leading regroup: free
    q = qkv[0].astype(compute_dtype)                         # (HB, S, dh)
    k = qkv[1].astype(compute_dtype)
    v = qkv[2].astype(compute_dtype)

    # Head-batched attention.  MXU operands in compute_dtype, f32 accumulation;
    # softmax elementwise path stays f32.
    s = jnp.einsum('bqd,bkd->bqk', q, k, preferred_element_type=f32)   # (HB,S,S)
    s = s - jnp.max(s, axis=-1, keepdims=True)
    p = jnp.exp(s)
    l = jnp.sum(p, axis=-1, keepdims=True)
    ctx = jnp.einsum('bqk,bkd->bqd', p.astype(compute_dtype), v,
                     preferred_element_type=f32)                        # (HB,S,dh)
    ctx = ctx / l        # deferred, exact normalization on the small context

    # (HB, S, dh) -> (block_b, S, H, dh); the (H, dh) -> D merge happens as a
    # free metadata reshape in the wrapper.
    ctx = ctx.reshape(n_heads, block_b, seq, d_head)
    o_ref[...] = jnp.transpose(ctx, (1, 2, 0, 3)).astype(o_ref.dtype)


def _msa_kernel_per_head(x_ref, w_ref, b_ref, o_ref, *,
                         n_heads, d_head, d, seq, block_b, compute_dtype):
    """Portable per-head fallback (previously validated structure).

    x_ref: (block_b, S, D)  w_ref: (D, 3D)  b_ref: (1, 3D)  o_ref: (block_b, S, D)
    """
    f32 = jnp.float32
    m = block_b * seq
    x2 = x_ref[...].reshape(m, d).astype(compute_dtype)
    qkv = jnp.dot(x2, w_ref[...], preferred_element_type=f32) + b_ref[...]

    for b in range(block_b):
        r0 = b * seq
        heads = []
        for h in range(n_heads):
            c0 = h * d_head
            qh = qkv[r0:r0 + seq, c0:c0 + d_head].astype(compute_dtype)
            kh = qkv[r0:r0 + seq, d + c0:d + c0 + d_head].astype(compute_dtype)
            vh = qkv[r0:r0 + seq, 2 * d + c0:2 * d + c0 + d_head].astype(compute_dtype)
            s = jax.lax.dot_general(qh, kh, (((1,), (1,)), ((), ())),
                                    preferred_element_type=f32)
            s = s - jnp.max(s, axis=-1, keepdims=True)
            p = jnp.exp(s)
            ctx = jnp.dot(p.astype(compute_dtype), vh, preferred_element_type=f32)
            heads.append(ctx / jnp.sum(p, axis=-1, keepdims=True))
        o_ref[b] = jnp.concatenate(heads, axis=-1).astype(o_ref.dtype)


# ---------------------------------------------------------------------------
# Heuristics
# ---------------------------------------------------------------------------

def _vmem_limit_bytes():
    """Derive the scoped-VMEM request from the actual part (v7x: 64 MiB physical,
    target <= ~40 MiB; v5e/v6e: 128 MiB physical, allow more)."""
    cap = 64 * 1024 * 1024          # conservative default if query fails
    try:
        cap = int(pltpu.get_tpu_info().vmem_capacity_bytes)
    except Exception:
        pass
    return max(32 * 1024 * 1024, min((cap * 5) // 8, 80 * 1024 * 1024))


def _pick_block_b(B, S, D, n_heads, vmem_limit):
    """Batch folding: amortize per-grid-step overhead for tiny B*S while
    (a) keeping live f32 intermediates within ~half the VMEM budget and
    (b) keeping >= 2 grid steps when B > 1 so the 'parallel' axis can be
    sharded across both TensorCores on v7x (near-free on 1-TC v5e/v6e).
    Among admissible divisors we take the largest, which also maximizes the
    projection's M = block_b*S toward the 128/256-row MXU sweet spot."""
    if S % 8 != 0:                  # avoid sublane-misaligned row folding
        return 1
    budget = vmem_limit // 2

    def live_bytes(bb):
        m = bb * S
        # x + qkv + q/k/v relayout + ctx/out (~10 * M * D f32) + score/prob tiles.
        return 4 * (10 * m * D + 2 * n_heads * bb * S * S)

    max_bb = B if B == 1 else max(1, B // 2)
    best = 1
    for bb in range(1, max_bb + 1):
        if B % bb == 0 and live_bytes(bb) <= budget:
            best = bb
    return best


# ---------------------------------------------------------------------------
# Public API
# ---------------------------------------------------------------------------

def fuse_msa_params(wq, bq, wk, bk, wv, bv, *, n_heads, compute_dtype=jnp.bfloat16):
    """Fuse the Q/K/V projection params once at setup time.

    Weights are stored (in, out); the 1/sqrt(d_head) softmax scale is folded
    into the Q columns and bias.  Weights are cast to compute_dtype (bf16 MXU
    operands by default); the bias stays f32 (added to the f32 accumulator)."""
    D = wq.shape[0]
    d_head = D // n_heads
    scale = 1.0 / float(d_head) ** 0.5
    w_qkv = jnp.concatenate(
        [wq.astype(jnp.float32) * scale,
         wk.astype(jnp.float32),
         wv.astype(jnp.float32)], axis=1).astype(compute_dtype)
    b_qkv = jnp.concatenate(
        [bq.astype(jnp.float32) * scale,
         bk.astype(jnp.float32),
         bv.astype(jnp.float32)]).reshape(1, 3 * D).astype(jnp.float32)
    return w_qkv, b_qkv


def my_msa_fused(x, w_qkv, b_qkv, *, n_heads, block_b=None,
                 compute_dtype=jnp.bfloat16):
    """x: (B, S, D); w_qkv: (D, 3D) in compute_dtype; b_qkv: (1, 3D) f32."""
    B, S, D = x.shape
    assert D % n_heads == 0
    d_head = D // n_heads
    assert w_qkv.shape == (D, 3 * D) and b_qkv.shape == (1, 3 * D)

    vmem_limit = _vmem_limit_bytes()
    if block_b is None:
        block_b = _pick_block_b(B, S, D, n_heads, vmem_limit)
    assert B % block_b == 0
    assert block_b == 1 or S % 8 == 0, "block_b > 1 with S % 8 != 0 is a relayout trap"

    def run(kernel_fn, out_rank4, single_buffer_weights):
        # Grid-invariant weight/bias: single buffer (they never change across steps).
        pkw = dict(pipeline_mode=pl.Buffered(1)) if single_buffer_weights else {}
        x_spec = pl.BlockSpec((block_b, S, D), lambda i: (i, 0, 0))
        w_spec = pl.BlockSpec((D, 3 * D), lambda i: (0, 0), **pkw)
        b_spec = pl.BlockSpec((1, 3 * D), lambda i: (0, 0), **pkw)
        if out_rank4:
            out_shape = jax.ShapeDtypeStruct((B, S, n_heads, d_head), x.dtype)
            o_spec = pl.BlockSpec((block_b, S, n_heads, d_head),
                                  lambda i: (i, 0, 0, 0))
        else:
            out_shape = jax.ShapeDtypeStruct((B, S, D), x.dtype)
            o_spec = pl.BlockSpec((block_b, S, D), lambda i: (i, 0, 0))

        kernel = functools.partial(
            kernel_fn, n_heads=n_heads, d_head=d_head, d=D, seq=S,
            block_b=block_b, compute_dtype=compute_dtype)

        out = pl.pallas_call(
            kernel,
            out_shape=out_shape,
            grid_spec=pltpu.PrefetchScalarGridSpec(
                num_scalar_prefetch=0,
                grid=(B // block_b,),
                in_specs=[x_spec, w_spec, b_spec],
                out_specs=o_spec),
            compiler_params=pltpu.CompilerParams(
                dimension_semantics=("parallel",),
                vmem_limit_bytes=vmem_limit),
        )(x, w_qkv, b_qkv)
        # (B, S, H, dh) -> (B, S, D) is a free metadata reshape (no-op for rank-3).
        return out.reshape(B, S, D)

    # Fallback ladder: prefer the heads-batched kernel with single-buffered
    # weights; degrade gracefully if a toolchain rejects Buffered(1) or the
    # batched relayout.  The last rung is the previously validated kernel.
    configs = (
        (_msa_kernel_batched, True, True),
        (_msa_kernel_batched, True, False),
        (_msa_kernel_per_head, False, False),
    )
    err = None
    for kernel_fn, out_rank4, single_buf in configs:
        try:
            return run(kernel_fn, out_rank4, single_buf)
        except Exception as e:              # lowering/compile issue -> safer config
            err = e
    raise err


def my_msa(x, wq, bq, wk, bk, wv, bv, *, n_heads, block_b=None,
           compute_dtype=jnp.bfloat16):
    """Convenience one-shot wrapper.  For repeated calls, pre-fuse the params
    once with fuse_msa_params() and call my_msa_fused()."""
    w_qkv, b_qkv = fuse_msa_params(wq, bq, wk, bk, wv, bv,
                                   n_heads=n_heads, compute_dtype=compute_dtype)
    return my_msa_fused(x, w_qkv, b_qkv, n_heads=n_heads, block_b=block_b,
                        compute_dtype=compute_dtype)


def my_msa_ref(x, wq, bq, wk, bk, wv, bv, *, n_heads):
    """Pure-JAX reference matching the PyTorch forward exactly."""
    B, S, D = x.shape
    d_head = D // n_heads
    q = x @ wq + bq
    k = x @ wk + bk
    v = x @ wv + bv
    q = q.reshape(B, S, n_heads, d_head).transpose(0, 2, 1, 3)
    k = k.reshape(B, S, n_heads, d_head).transpose(0, 2, 1, 3)
    v = v.reshape(B, S, n_heads, d_head).transpose(0, 2, 1, 3)
    scores = jnp.einsum("bhqd,bhkd->bhqk", q, k) / jnp.sqrt(jnp.float32(d_head))
    w = jax.nn.softmax(scores, axis=-1)
    out = jnp.einsum("bhqk,bhkd->bhqd", w, v)
    return out.transpose(0, 2, 1, 3).reshape(B, S, D)


if __name__ == "__main__":
    B, S, D, n_heads = 2, 8, 32, 2

    key = jax.random.PRNGKey(0)
    kx, kq, kbq, kk, kbk, kv, kbv = jax.random.split(key, 7)

    x = jax.random.normal(kx, (B, S, D), dtype=jnp.float32)
    # Deterministic synthetic parameters (Linear(d, d) equivalents, stored (in, out)).
    wq = jax.random.normal(kq, (D, D), dtype=jnp.float32) * 0.1
    bq = jax.random.normal(kbq, (D,), dtype=jnp.float32) * 0.1
    wk = jax.random.normal(kk, (D, D), dtype=jnp.float32) * 0.1
    bk = jax.random.normal(kbk, (D,), dtype=jnp.float32) * 0.1
    wv = jax.random.normal(kv, (D, D), dtype=jnp.float32) * 0.1
    bv = jax.random.normal(kbv, (D,), dtype=jnp.float32) * 0.1

    ref = my_msa_ref(x, wq, bq, wk, bk, wv, bv, n_heads=n_heads)

    # (1) f32 compute path: tight parity with the PyTorch/JAX reference.
    w32, b32 = fuse_msa_params(wq, bq, wk, bk, wv, bv, n_heads=n_heads,
                               compute_dtype=jnp.float32)
    out32 = jax.block_until_ready(
        my_msa_fused(x, w32, b32, n_heads=n_heads, compute_dtype=jnp.float32))
    assert out32.shape == (B, S, D)
    assert bool(jnp.allclose(out32, ref, atol=1e-3, rtol=1e-3)), "f32 path mismatch"

    # (2) default bf16-MXU path (f32 accumulation): production configuration.
    wbf, bbf = fuse_msa_params(wq, bq, wk, bk, wv, bv, n_heads=n_heads)
    outbf = jax.block_until_ready(my_msa_fused(x, wbf, bbf, n_heads=n_heads))
    assert outbf.shape == (B, S, D)
    # Tolerance covers bf16 operand rounding in the projection/QK^T/PV matmuls.
    assert bool(jnp.allclose(outbf, ref, atol=5e-2, rtol=5e-2)), "bf16 path mismatch"

    print("KERNEL_OK")
</pallas_src>

<mosaic_0001>
module attributes {stable_mosaic.version = 11 : i64} {
  func.func @_msa_kernel_batched(%arg0: i32, %arg1: memref<1x8x32xf32, #tpu.memory_space<vmem>>, %arg2: memref<32x96xf32, #tpu.memory_space<vmem>>, %arg3: memref<1x96xf32, #tpu.memory_space<vmem>>, %arg4: memref<1x8x2x16xf32, #tpu.memory_space<vmem>>) attributes {dimension_semantics = [#tpu.dimension_semantics<parallel>], iteration_bounds = array<i64: 2>, scalar_prefetch = 0 : i64, scratch_operands = 0 : i64, tpu.core_type = #tpu.core_type<tc>, window_params = [{transform_indices = @transform_0, window_bounds = array<i64: 1, 8, 32>}, {pipeline_mode = #tpu.pipeline_mode<synchronous>, transform_indices = @transform_1, window_bounds = array<i64: 32, 96>}, {pipeline_mode = #tpu.pipeline_mode<synchronous>, transform_indices = @transform_2, window_bounds = array<i64: 1, 96>}, {transform_indices = @transform_3, window_bounds = array<i64: 1, 8, 2, 16>}]} {
    %c0 = arith.constant 0 : index
    %c0_0 = arith.constant 0 : index
    %c0_1 = arith.constant 0 : index
    %0 = vector.load %arg1[%c0, %c0_0, %c0_1] : memref<1x8x32xf32, #tpu.memory_space<vmem>>, vector<1x8x32xf32>
    %1 = vector.shape_cast %0 : vector<1x8x32xf32> to vector<8x32xf32>
    %c0_2 = arith.constant 0 : index
    %c0_3 = arith.constant 0 : index
    %2 = vector.load %arg2[%c0_2, %c0_3] : memref<32x96xf32, #tpu.memory_space<vmem>>, vector<32x96xf32>
    %cst = arith.constant dense<0.000000e+00> : vector<8x96xf32>
    %3 = tpu.matmul %1, %2, %cst {dimension_numbers = #tpu.dot_dimension_numbers<[1], [0], [0], [1], [0, 0, 1, 1], [], []>} : vector<8x32xf32>, vector<32x96xf32>, vector<8x96xf32> -> vector<8x96xf32>
    %c0_4 = arith.constant 0 : index
    %c0_5 = arith.constant 0 : index
    %4 = vector.load %arg3[%c0_4, %c0_5] : memref<1x96xf32, #tpu.memory_space<vmem>>, vector<1x96xf32>
    %5 = vector.broadcast %4 : vector<1x96xf32> to vector<8x96xf32>
    %6 = arith.addf %3, %5 : vector<8x96xf32>
    %7 = vector.shape_cast %6 : vector<8x96xf32> to vector<1x8x6x16xf32>
    %8 = tpu.transpose %7, [2, 0, 1, 3] : vector<1x8x6x16xf32> -> vector<6x1x8x16xf32>
    %9 = vector.shape_cast %8 : vector<6x1x8x16xf32> to vector<3x2x8x16xf32>
    %10 = vector.extract_strided_slice %9 {offsets = [0, 0, 0, 0], sizes = [1, 2, 8, 16], strides = [1, 1, 1, 1]} : vector<3x2x8x16xf32> to vector<1x2x8x16xf32>
    %11 = vector.shape_cast %10 : vector<1x2x8x16xf32> to vector<2x8x16xf32>
    %12 = vector.extract_strided_slice %9 {offsets = [1, 0, 0, 0], sizes = [1, 2, 8, 16], strides = [1, 1, 1, 1]} : vector<3x2x8x16xf32> to vector<1x2x8x16xf32>
    %13 = vector.shape_cast %12 : vector<1x2x8x16xf32> to vector<2x8x16xf32>
    %14 = vector.extract_strided_slice %9 {offsets = [2, 0, 0, 0], sizes = [1, 2, 8, 16], strides = [1, 1, 1, 1]} : vector<3x2x8x16xf32> to vector<1x2x8x16xf32>
    %15 = vector.shape_cast %14 : vector<1x2x8x16xf32> to vector<2x8x16xf32>
    "tpu.trace_start"() <{level = 10 : i32, message = "bqd,bkd->bqk"}> : () -> ()
    %cst_6 = arith.constant dense<0.000000e+00> : vector<2x8x8xf32>
    %16 = tpu.matmul %11, %13, %cst_6 {dimension_numbers = #tpu.dot_dimension_numbers<[2], [2], [1], [1], [0, 0, 0, 1, 1, 1], [0], [0]>} : vector<2x8x16xf32>, vector<2x8x16xf32>, vector<2x8x8xf32> -> vector<2x8x8xf32>
    "tpu.trace_stop"() : () -> ()
    %cst_7 = arith.constant dense<0xFF800000> : vector<2x8xf32>
    %17 = vector.multi_reduction <maximumf>, %16, %cst_7 [2] : vector<2x8x8xf32> to vector<2x8xf32>
    %18 = vector.shape_cast %17 : vector<2x8xf32> to vector<2x8x1xf32>
    %19 = vector.broadcast %18 : vector<2x8x1xf32> to vector<2x8x8xf32>
    %20 = arith.subf %16, %19 : vector<2x8x8xf32>
    %21 = math.exp %20 : vector<2x8x8xf32>
    %cst_8 = arith.constant dense<0.000000e+00> : vector<2x8xf32>
    %22 = vector.multi_reduction <add>, %21, %cst_8 [2] : vector<2x8x8xf32> to vector<2x8xf32>
    %23 = vector.shape_cast %22 : vector<2x8xf32> to vector<2x8x1xf32>
    "tpu.trace_start"() <{level = 10 : i32, message = "bqk,bkd->bqd"}> : () -> ()
    %cst_9 = arith.constant dense<0.000000e+00> : vector<2x8x16xf32>
    %24 = tpu.matmul %21, %15, %cst_9 {dimension_numbers = #tpu.dot_dimension_numbers<[2], [1], [1], [2], [0, 0, 0, 1, 1, 2], [0], [0]>} : vector<2x8x8xf32>, vector<2x8x16xf32>, vector<2x8x16xf32> -> vector<2x8x16xf32>
    "tpu.trace_stop"() : () -> ()
    %25 = vector.broadcast %23 : vector<2x8x1xf32> to vector<2x8x16xf32>
    %26 = arith.divf %24, %25 : vector<2x8x16xf32>
    %27 = vector.shape_cast %26 : vector<2x8x16xf32> to vector<2x1x8x16xf32>
    %28 = tpu.transpose %27, [1, 2, 0, 3] : vector<2x1x8x16xf32> -> vector<1x8x2x16xf32>
    %c0_10 = arith.constant 0 : index
    %c0_11 = arith.constant 0 : index
    %c0_12 = arith.constant 0 : index
    %c0_13 = arith.constant 0 : index
    %29 = vector.load %arg4[%c0_10, %c0_11, %c0_12, %c0_13] : memref<1x8x2x16xf32, #tpu.memory_space<vmem>>, vector<1x8x2x16xf32>
    tpu.vector_store %arg4[%c0_10, %c0_11, %c0_12, %c0_13], %28 {strides = array<i32>} : memref<1x8x2x16xf32, #tpu.memory_space<vmem>>, vector<1x8x2x16xf32>,
    return
  }
  func.func @transform_0(%arg0: i32) -> (i32, i32, i32) {
    %c0_i32 = arith.constant 0 : i32
    %c0_i32_0 = arith.constant 0 : i32
    %c0_i32_1 = arith.constant 0 : i32
    return %arg0, %c0_i32, %c0_i32_0 : i32, i32, i32
  }
  func.func @transform_1(%arg0: i32) -> (i32, i32) {
    %c0_i32 = arith.constant 0 : i32
    %c0_i32_0 = arith.constant 0 : i32
    %c0_i32_1 = arith.constant 0 : i32
    return %c0_i32, %c0_i32_0 : i32, i32
  }
  func.func @transform_2(%arg0: i32) -> (i32, i32) {
    %c0_i32 = arith.constant 0 : i32
    %c0_i32_0 = arith.constant 0 : i32
    %c0_i32_1 = arith.constant 0 : i32
    return %c0_i32, %c0_i32_0 : i32, i32
  }
  func.func @transform_3(%arg0: i32) -> (i32, i32, i32, i32) {
    %c0_i32 = arith.constant 0 : i32
    %c0_i32_0 = arith.constant 0 : i32
    %c0_i32_1 = arith.constant 0 : i32
    %c0_i32_2 = arith.constant 0 : i32
    return %arg0, %c0_i32, %c0_i32_0, %c0_i32_1 : i32, i32, i32, i32
  }
}

module attributes {stable_mosaic.version = 11 : i64} {
  func.func @_msa_kernel_batched(%arg0: i32, %arg1: memref<1x8x32xf32, #tpu.memory_space<vmem>>, %arg2: memref<32x96xf32, #tpu.memory_space<vmem>>, %arg3: memref<1x96xf32, #tpu.memory_space<vmem>>, %arg4: memref<1x8x2x16xf32, #tpu.memory_space<vmem>>) attributes {dimension_semantics = [#tpu.dimension_semantics<parallel>], iteration_bounds = array<i64: 2>, scalar_prefetch = 0 : i64, scratch_operands = 0 : i64, tpu.core_type = #tpu.core_type<tc>, window_params = [{transform_indices = @transform_0, window_bounds = array<i64: 1, 8, 32>}, {pipeline_mode = #tpu.pipeline_mode<synchronous>, transform_indices = @transform_1, window_bounds = array<i64: 32, 96>}, {pipeline_mode = #tpu.pipeline_mode<synchronous>, transform_indices = @transform_2, window_bounds = array<i64: 1, 96>}, {transform_indices = @transform_3, window_bounds = array<i64: 1, 8, 2, 16>}]} {
    %c0 = arith.constant 0 : index
    %c0_0 = arith.constant 0 : index
    %c0_1 = arith.constant 0 : index
    %0 = vector.load %arg1[%c0, %c0_0, %c0_1] : memref<1x8x32xf32, #tpu.memory_space<vmem>>, vector<1x8x32xf32>
    %1 = vector.shape_cast %0 : vector<1x8x32xf32> to vector<8x32xf32>
    %c0_2 = arith.constant 0 : index
    %c0_3 = arith.constant 0 : index
    %2 = vector.load %arg2[%c0_2, %c0_3] : memref<32x96xf32, #tpu.memory_space<vmem>>, vector<32x96xf32>
    %cst = arith.constant dense<0.000000e+00> : vector<8x96xf32>
    %3 = tpu.matmul %1, %2, %cst {dimension_numbers = #tpu.dot_dimension_numbers<[1], [0], [0], [1], [0, 0, 1, 1], [], []>} : vector<8x32xf32>, vector<32x96xf32>, vector<8x96xf32> -> vector<8x96xf32>
    %c0_4 = arith.constant 0 : index
    %c0_5 = arith.constant 0 : index
    %4 = vector.load %arg3[%c0_4, %c0_5] : memref<1x96xf32, #tpu.memory_space<vmem>>, vector<1x96xf32>
    %5 = vector.broadcast %4 : vector<1x96xf32> to vector<8x96xf32>
    %6 = arith.addf %3, %5 : vector<8x96xf32>
    %7 = vector.shape_cast %6 : vector<8x96xf32> to vector<1x8x6x16xf32>
    %8 = tpu.transpose %7, [2, 0, 1, 3] : vector<1x8x6x16xf32> -> vector<6x1x8x16xf32>
    %9 = vector.shape_cast %8 : vector<6x1x8x16xf32> to vector<3x2x8x16xf32>
    %10 = vector.extract_strided_slice %9 {offsets = [0, 0, 0, 0], sizes = [1, 2, 8, 16], strides = [1, 1, 1, 1]} : vector<3x2x8x16xf32> to vector<1x2x8x16xf32>
    %11 = vector.shape_cast %10 : vector<1x2x8x16xf32> to vector<2x8x16xf32>
    %12 = vector.extract_strided_slice %9 {offsets = [1, 0, 0, 0], sizes = [1, 2, 8, 16], strides = [1, 1, 1, 1]} : vector<3x2x8x16xf32> to vector<1x2x8x16xf32>
    %13 = vector.shape_cast %12 : vector<1x2x8x16xf32> to vector<2x8x16xf32>
    %14 = vector.extract_strided_slice %9 {offsets = [2, 0, 0, 0], sizes = [1, 2, 8, 16], strides = [1, 1, 1, 1]} : vector<3x2x8x16xf32> to vector<1x2x8x16xf32>
    %15 = vector.shape_cast %14 : vector<1x2x8x16xf32> to vector<2x8x16xf32>
    "tpu.trace_start"() <{level = 10 : i32, message = "bqd,bkd->bqk"}> : () -> ()
    %cst_6 = arith.constant dense<0.000000e+00> : vector<2x8x8xf32>
    %16 = tpu.matmul %11, %13, %cst_6 {dimension_numbers = #tpu.dot_dimension_numbers<[2], [2], [1], [1], [0, 0, 0, 1, 1, 1], [0], [0]>} : vector<2x8x16xf32>, vector<2x8x16xf32>, vector<2x8x8xf32> -> vector<2x8x8xf32>
    "tpu.trace_stop"() : () -> ()
    %cst_7 = arith.constant dense<0xFF800000> : vector<2x8xf32>
    %17 = vector.multi_reduction <maximumf>, %16, %cst_7 [2] : vector<2x8x8xf32> to vector<2x8xf32>
    %18 = vector.shape_cast %17 : vector<2x8xf32> to vector<2x8x1xf32>
    %19 = vector.broadcast %18 : vector<2x8x1xf32> to vector<2x8x8xf32>
    %20 = arith.subf %16, %19 : vector<2x8x8xf32>
    %21 = math.exp %20 : vector<2x8x8xf32>
    %cst_8 = arith.constant dense<0.000000e+00> : vector<2x8xf32>
    %22 = vector.multi_reduction <add>, %21, %cst_8 [2] : vector<2x8x8xf32> to vector<2x8xf32>
    %23 = vector.shape_cast %22 : vector<2x8xf32> to vector<2x8x1xf32>
    "tpu.trace_start"() <{level = 10 : i32, message = "bqk,bkd->bqd"}> : () -> ()
    %cst_9 = arith.constant dense<0.000000e+00> : vector<2x8x16xf32>
    %24 = tpu.matmul %21, %15, %cst_9 {dimension_numbers = #tpu.dot_dimension_numbers<[2], [1], [1], [2], [0, 0, 0, 1, 1, 2], [0], [0]>} : vector<2x8x8xf32>, vector<2x8x16xf32>, vector<2x8x16xf32> -> vector<2x8x16xf32>
    "tpu.trace_stop"() : () -> ()
    %25 = vector.broadcast %23 : vector<2x8x1xf32> to vector<2x8x16xf32>
    %26 = arith.divf %24, %25 : vector<2x8x16xf32>
    %27 = vector.shape_cast %26 : vector<2x8x16xf32> to vector<2x1x8x16xf32>
    %28 = tpu.transpose %27, [1, 2, 0, 3] : vector<2x1x8x16xf32> -> vector<1x8x2x16xf32>
    %c0_10 = arith.constant 0 : index
    %c0_11 = arith.constant 0 : index
    %c0_12 = arith.constant 0 : index
    %c0_13 = arith.constant 0 : index
    %29 = vector.load %arg4[%c0_10, %c0_11, %c0_12, %c0_13] : memref<1x8x2x16xf32, #tpu.memory_space<vmem>>, vector<1x8x2x16xf32>
    tpu.vector_store %arg4[%c0_10, %c0_11, %c0_12, %c0_13], %28 {strides = array<i32>} : memref<1x8x2x16xf32, #tpu.memory_space<vmem>>, vector<1x8x2x16xf32>,
    return
  }
  func.func @transform_0(%arg0: i32) -> (i32, i32, i32) {
    %c0_i32 = arith.constant 0 : i32
    %c0_i32_0 = arith.constant 0 : i32
    %c0_i32_1 = arith.constant 0 : i32
    return %arg0, %c0_i32, %c0_i32_0 : i32, i32, i32
  }
  func.func @transform_1(%arg0: i32) -> (i32, i32) {
    %c0_i32 = arith.constant 0 : i32
    %c0_i32_0 = arith.constant 0 : i32
    %c0_i32_1 = arith.constant 0 : i32
    return %c0_i32, %c0_i32_0 : i32, i32
  }
  func.func @transform_2(%arg0: i32) -> (i32, i32) {
    %c0_i32 = arith.constant 0 : i32
    %c0_i32_0 = arith.constant 0 : i32
    %c0_i32_1 = arith.constant 0 : i32
    return %c0_i32, %c0_i32_0 : i32, i32
  }
  func.func @transform_3(%arg0: i32) -> (i32, i32, i32, i32) {
    %c0_i32 = arith.constant 0 : i32
    %c0_i32_0 = arith.constant 0 : i32
    %c0_i32_1 = arith.constant 0 : i32
    %c0_i32_2 = arith.constant 0 : i32
    return %arg0, %c0_i32, %c0_i32_0, %c0_i32_1 : i32, i32, i32, i32
  }
}

module attributes {stable_mosaic.version = 11 : i64} {
  func.func @_msa_kernel_per_head(%arg0: i32, %arg1: memref<1x8x32xf32, #tpu.memory_space<vmem>>, %arg2: memref<32x96xf32, #tpu.memory_space<vmem>>, %arg3: memref<1x96xf32, #tpu.memory_space<vmem>>, %arg4: memref<1x8x32xf32, #tpu.memory_space<vmem>>) attributes {dimension_semantics = [#tpu.dimension_semantics<parallel>], iteration_bounds = array<i64: 2>, scalar_prefetch = 0 : i64, scratch_operands = 0 : i64, tpu.core_type = #tpu.core_type<tc>, window_params = [{transform_indices = @transform_0, window_bounds = array<i64: 1, 8, 32>}, {pipeline_mode = #tpu.pipeline_mode<synchronous>, transform_indices = @transform_1, window_bounds = array<i64: 32, 96>}, {pipeline_mode = #tpu.pipeline_mode<synchronous>, transform_indices = @transform_2, window_bounds = array<i64: 1, 96>}, {transform_indices = @transform_3, window_bounds = array<i64: 1, 8, 32>}]} {
    %c0 = arith.constant 0 : index
    %c0_0 = arith.constant 0 : index
    %c0_1 = arith.constant 0 : index
    %0 = vector.load %arg1[%c0, %c0_0, %c0_1] : memref<1x8x32xf32, #tpu.memory_space<vmem>>, vector<1x8x32xf32>
    %1 = vector.shape_cast %0 : vector<1x8x32xf32> to vector<8x32xf32>
    %c0_2 = arith.constant 0 : index
    %c0_3 = arith.constant 0 : index
    %2 = vector.load %arg2[%c0_2, %c0_3] : memref<32x96xf32, #tpu.memory_space<vmem>>, vector<32x96xf32>
    %cst = arith.constant dense<0.000000e+00> : vector<8x96xf32>
    %3 = tpu.matmul %1, %2, %cst {dimension_numbers = #tpu.dot_dimension_numbers<[1], [0], [0], [1], [0, 0, 1, 1], [], []>} : vector<8x32xf32>, vector<32x96xf32>, vector<8x96xf32> -> vector<8x96xf32>
    %c0_4 = arith.constant 0 : index
    %c0_5 = arith.constant 0 : index
    %4 = vector.load %arg3[%c0_4, %c0_5] : memref<1x96xf32, #tpu.memory_space<vmem>>, vector<1x96xf32>
    %5 = vector.broadcast %4 : vector<1x96xf32> to vector<8x96xf32>
    %6 = arith.addf %3, %5 : vector<8x96xf32>
    %7 = vector.extract_strided_slice %6 {offsets = [0, 0], sizes = [8, 16], strides = [1, 1]} : vector<8x96xf32> to vector<8x16xf32>
    %8 = vector.extract_strided_slice %6 {offsets = [0, 32], sizes = [8, 16], strides = [1, 1]} : vector<8x96xf32> to vector<8x16xf32>
    %9 = vector.extract_strided_slice %6 {offsets = [0, 64], sizes = [8, 16], strides = [1, 1]} : vector<8x96xf32> to vector<8x16xf32>
    %cst_6 = arith.constant dense<0.000000e+00> : vector<8x8xf32>
    %10 = tpu.matmul %7, %8, %cst_6 {dimension_numbers = #tpu.dot_dimension_numbers<[1], [1], [0], [0], [0, 0, 1, 0], [], []>} : vector<8x16xf32>, vector<8x16xf32>, vector<8x8xf32> -> vector<8x8xf32>
    %cst_7 = arith.constant dense<0xFF800000> : vector<8xf32>
    %11 = vector.multi_reduction <maximumf>, %10, %cst_7 [1] : vector<8x8xf32> to vector<8xf32>
    %12 = vector.shape_cast %11 : vector<8xf32> to vector<8x1xf32>
    %13 = vector.broadcast %12 : vector<8x1xf32> to vector<8x8xf32>
    %14 = arith.subf %10, %13 : vector<8x8xf32>
    %15 = math.exp %14 : vector<8x8xf32>
    %cst_8 = arith.constant dense<0.000000e+00> : vector<8x16xf32>
    %16 = tpu.matmul %15, %9, %cst_8 {dimension_numbers = #tpu.dot_dimension_numbers<[1], [0], [0], [1], [0, 0, 1, 1], [], []>} : vector<8x8xf32>, vector<8x16xf32>, vector<8x16xf32> -> vector<8x16xf32>
    %cst_9 = arith.constant dense<0.000000e+00> : vector<8xf32>
    %17 = vector.multi_reduction <add>, %15, %cst_9 [1] : vector<8x8xf32> to vector<8xf32>
    %18 = vector.shape_cast %17 : vector<8xf32> to vector<8x1xf32>
    %19 = vector.broadcast %18 : vector<8x1xf32> to vector<8x16xf32>
    %20 = arith.divf %16, %19 : vector<8x16xf32>
    %21 = vector.extract_strided_slice %6 {offsets = [0, 16], sizes = [8, 16], strides = [1, 1]} : vector<8x96xf32> to vector<8x16xf32>
    %22 = vector.extract_strided_slice %6 {offsets = [0, 48], sizes = [8, 16], strides = [1, 1]} : vector<8x96xf32> to vector<8x16xf32>
    %23 = vector.extract_strided_slice %6 {offsets = [0, 80], sizes = [8, 16], strides = [1, 1]} : vector<8x96xf32> to vector<8x16xf32>
    %cst_10 = arith.constant dense<0.000000e+00> : vector<8x8xf32>
    %24 = tpu.matmul %21, %22, %cst_10 {dimension_numbers = #tpu.dot_dimension_numbers<[1], [1], [0], [0], [0, 0, 1, 0], [], []>} : vector<8x16xf32>, vector<8x16xf32>, vector<8x8xf32> -> vector<8x8xf32>
    %cst_11 = arith.constant dense<0xFF800000> : vector<8xf32>
    %25 = vector.multi_reduction <maximumf>, %24, %cst_11 [1] : vector<8x8xf32> to vector<8xf32>
    %26 = vector.shape_cast %25 : vector<8xf32> to vector<8x1xf32>
    %27 = vector.broadcast %26 : vector<8x1xf32> to vector<8x8xf32>
    %28 = arith.subf %24, %27 : vector<8x8xf32>
    %29 = math.exp %28 : vector<8x8xf32>
    %cst_12 = arith.constant dense<0.000000e+00> : vector<8x16xf32>
    %30 = tpu.matmul %29, %23, %cst_12 {dimension_numbers = #tpu.dot_dimension_numbers<[1], [0], [0], [1], [0, 0, 1, 1], [], []>} : vector<8x8xf32>, vector<8x16xf32>, vector<8x16xf32> -> vector<8x16xf32>
    %cst_13 = arith.constant dense<0.000000e+00> : vector<8xf32>
    %31 = vector.multi_reduction <add>, %29, %cst_13 [1] : vector<8x8xf32> to vector<8xf32>
    %32 = vector.shape_cast %31 : vector<8xf32> to vector<8x1xf32>
    %33 = vector.broadcast %32 : vector<8x1xf32> to vector<8x16xf32>
    %34 = arith.divf %30, %33 : vector<8x16xf32>
    %35 = tpu.concatenate %20, %34 in 1 : vector<8x16xf32>, vector<8x16xf32> -> vector<8x32xf32>
    %c0_14 = arith.constant 0 : index
    %c0_15 = arith.constant 0 : index
    %c0_16 = arith.constant 0 : index
    %36 = vector.load %arg4[%c0_14, %c0_15, %c0_16] : memref<1x8x32xf32, #tpu.memory_space<vmem>>, vector<1x8x32xf32>
    %37 = vector.shape_cast %36 : vector<1x8x32xf32> to vector<8x32xf32>
    %38 = vector.shape_cast %35 : vector<8x32xf32> to vector<1x8x32xf32>
    tpu.vector_store %arg4[%c0_14, %c0_15, %c0_16], %38 {strides = array<i32>} : memref<1x8x32xf32, #tpu.memory_space<vmem>>, vector<1x8x32xf32>,
    return
  }
  func.func @transform_0(%arg0: i32) -> (i32, i32, i32) {
    %c0_i32 = arith.constant 0 : i32
    %c0_i32_0 = arith.constant 0 : i32
    %c0_i32_1 = arith.constant 0 : i32
    return %arg0, %c0_i32, %c0_i32_0 : i32, i32, i32
  }
  func.func @transform_1(%arg0: i32) -> (i32, i32) {
    %c0_i32 = arith.constant 0 : i32
    %c0_i32_0 = arith.constant 0 : i32
    %c0_i32_1 = arith.constant 0 : i32
    return %c0_i32, %c0_i32_0 : i32, i32
  }
  func.func @transform_2(%arg0: i32) -> (i32, i32) {
    %c0_i32 = arith.constant 0 : i32
    %c0_i32_0 = arith.constant 0 : i32
    %c0_i32_1 = arith.constant 0 : i32
    return %c0_i32, %c0_i32_0 : i32, i32
  }
  func.func @transform_3(%arg0: i32) -> (i32, i32, i32) {
    %c0_i32 = arith.constant 0 : i32
    %c0_i32_0 = arith.constant 0 : i32
    %c0_i32_1 = arith.constant 0 : i32
    return %arg0, %c0_i32, %c0_i32_0 : i32, i32, i32
  }
}

</mosaic_0001>

<llo_original>
// kernel: tpu_custom_call.1
$region0: #{tpu_custom_call.1}
  #allocation0 [shape = 'u32[]', space=smem, size = 0x4, offset = 0x4, fixed_abs, tag = 'smem constant byte address 0x4 - core index']
  #allocation1 [shape = 'u32[72,128]{1,0:T(1,128)}', space=vmem, size = 0x9000, scoped, tag = 'internal scratch']
  %s0 = inlined_call_operand.hbm [shape: f32[2,8,32], index: 0, kind: input, shape index: {}]
  %s1 = inlined_call_operand.hbm [shape: f32[32,96], index: 1, kind: input, shape index: {}]
  %s2 = inlined_call_operand.vmem [shape: f32[1,96], index: 2, kind: input, shape index: {}]
  %s3 = inlined_call_operand.hbm [shape: f32[2,8,2,16], index: 3, kind: output, shape index: {}]
  %s4 = sld [smem:[#allocation0]]
  $region53: #{tpu_custom_call.1} parent=0
    _
  %s6 = ssub.s32 1, %s4
  %s7 = scalar_select 0, %s6, %s4
  $region1: #{tpu_custom_call.1} parent=0
    #allocation2 [shape = 'u8[8192]{0}', space=vmem, size = 0x2000, scoped, tag = 'input window, operand 0']
    #allocation3 [shape = 's32[2]{0}', space=sflag, size = 0x8, scoped, tag = 'scoped memory for tpu_custom_call.1']
    #allocation4 [shape = 's32[2]{0}', space=sflag, size = 0x8, scoped, tag = 'scoped memory for tpu_custom_call.1']
    #allocation5 [shape = 'u8[16384]{0}', space=vmem, size = 0x4000, scoped, tag = 'input window, operand 1, single buffered']
    #allocation6 [shape = 's32[1]{0}', space=sflag, size = 0x4, scoped, tag = 'scoped memory for tpu_custom_call.1']
    #allocation7 [shape = 'u8[16384]{0}', space=vmem, size = 0x4000, scoped, tag = 'output window, operand 0']
    %8 = vsyncpa [#allocation3], 0
    %s9 = scalar_lea.sflag [#allocation3], 1
    %10 = vsyncpa %s9, 0
    %11 = vsyncpa [#allocation6], 0
    %12 = vsyncpa [#allocation4], 0
    %s13 = scalar_lea.sflag [#allocation4], 1
    %14 = vsyncpa %s13, 0
    loop: start=0, step=1, limit=4
    $region2: #{tpu_custom_call.1} parent=1 // loop_pre_header
      _
    $region3: #{tpu_custom_call.1} parent=1 // loop_header
      %s16 = sphi 0, %s20
      %p17 = scmp.ge.s32.totalorder %s16, 4
      %s26 = sphi 0, %s28
      %s29 = sphi 0, %s26
      %s30 = sphi 0, %s29
      %s46 = sphi 0, %s30
      %s50 = sphi 0, %s50
      %s52 = sphi 0, %s50
      %s53 = sphi 0, %s52
      %s67 = sphi 0, %s53
      %s71 = sphi 0, %s71
      %s73 = sphi 0, %s71
      %s74 = sphi 0, %s73
      %s88 = sphi 0, %s74
      %s94 = sphi 0, %s96
      %s97 = sphi 0, %s94
      %s98 = sphi 0, %s97
      %s114 = sphi 0, %s98
    $region4: #{tpu_custom_call.1} parent=1 // loop_header_branch
      %19 = sbr.rel (%p17) target = $region8
    $region5: #{tpu_custom_call.1} parent=1 // loop_body
      %s21 = ssub.s32 %s16, 1
      %s22 = ssub.s32 %s16, 2
      %s23 = sadd.s32 %s16, 1
      %s24 = ssub.s32 %s16, %s23
      %p25 = scmp.eq.s32.totalorder %s24, 0
      %s27 = sadd.s32 %s26, 1
      %s28 = scalar_select %p25, %s26, %s27
      %p31 = pneg %p25
      %p32 = scmp.eq.s32.totalorder %s16, 1
      %p33 = por %p31, %p32
      %p34 = scmp.ne.s32.totalorder %s26, %s29
      %p35 = scmp.eq.s32.totalorder %s16, 0
      %p36 = por %p34, %p35
      %p37 = scmp.ne.s32.totalorder %s26, %s29
      %p38 = scmp.eq.s32.totalorder %s21, 1
      %p39 = por %p37, %p38
      %p40 = scmp.ne.s32.totalorder %s29, %s30
      %p41 = scmp.eq.s32.totalorder %s21, 0
      %p42 = por %p40, %p41
      %p43 = scmp.ne.s32.totalorder %s29, %s30
      %p44 = scmp.eq.s32.totalorder %s22, 1
      %p45 = por %p43, %p44
      %p47 = scmp.ne.s32.totalorder %s30, %s46
      %p48 = scmp.eq.s32.totalorder %s22, 0
      %p49 = por %p47, %p48
      %s51 = sadd.s32 %s50, 1
      %p54 = scmp.eq.s32.totalorder %s16, 1
      %p55 = scmp.ne.s32.totalorder %s50, %s52
      %p56 = scmp.eq.s32.totalorder %s16, 0
      %p57 = por %p55, %p56
      %p58 = scmp.ne.s32.totalorder %s50, %s52
      %p59 = scmp.eq.s32.totalorder %s21, 1
      %p60 = por %p58, %p59
      %p61 = scmp.ne.s32.totalorder %s52, %s53
      %p62 = scmp.eq.s32.totalorder %s21, 0
      %p63 = por %p61, %p62
      %p64 = scmp.ne.s32.totalorder %s52, %s53
      %p65 = scmp.eq.s32.totalorder %s22, 1
      %p66 = por %p64, %p65
      %p68 = scmp.ne.s32.totalorder %s53, %s67
      %p69 = scmp.eq.s32.totalorder %s22, 0
      %p70 = por %p68, %p69
      %s72 = sadd.s32 %s71, 1
      %p75 = scmp.eq.s32.totalorder %s16, 1
      %p76 = scmp.ne.s32.totalorder %s71, %s73
      %p77 = scmp.eq.s32.totalorder %s16, 0
      %p78 = por %p76, %p77
      %p79 = scmp.ne.s32.totalorder %s71, %s73
      %p80 = scmp.eq.s32.totalorder %s21, 1
      %p81 = por %p79, %p80
      %p82 = scmp.ne.s32.totalorder %s73, %s74
      %p83 = scmp.eq.s32.totalorder %s21, 0
      %p84 = por %p82, %p83
      %p85 = scmp.ne.s32.totalorder %s73, %s74
      %p86 = scmp.eq.s32.totalorder %s22, 1
      %p87 = por %p85, %p86
      %p89 = scmp.ne.s32.totalorder %s74, %s88
      %p90 = scmp.eq.s32.totalorder %s22, 0
      %p91 = por %p89, %p90
      %s92 = ssub.s32 %s16, %s23
      %p93 = scmp.eq.s32.totalorder %s92, 0
      %s95 = sadd.s32 %s94, 1
      %s96 = scalar_select %p93, %s94, %s95
      %p99 = pneg %p93
      %p100 = scmp.eq.s32.totalorder %s16, 1
      %p101 = por %p99, %p100
      %p102 = scmp.ne.s32.totalorder %s94, %s97
      %p103 = scmp.eq.s32.totalorder %s16, 0
      %p104 = por %p102, %p103
      %p105 = scmp.ne.s32.totalorder %s94, %s97
      %p106 = scmp.eq.s32.totalorder %s21, 1
      %p107 = por %p105, %p106
      %p108 = scmp.ne.s32.totalorder %s97, %s98
      %p109 = scmp.eq.s32.totalorder %s21, 0
      %p110 = por %p108, %p109
      %p111 = scmp.ne.s32.totalorder %s97, %s98
      %p112 = scmp.eq.s32.totalorder %s22, 1
      %p113 = por %p111, %p112
      %p115 = scmp.ne.s32.totalorder %s98, %s114
      %p116 = scmp.eq.s32.totalorder %s22, 0
      %p117 = por %p115, %p116
      %p118 = scmp.le.s32.totalorder 1, %s16
      %p119 = scmp.lt.s32.totalorder %s16, 3
      %p120 = pnand %p118, %p119
      %p121 = pneg %p120
      // Predicated region
      $region9: #{tpu_custom_call.1} parent=5 // pred_check
        _
      $region10: #{tpu_custom_call.1} parent=5 // pred_check_branch
        %123 = sbr.rel (%p120) target = $region12
      $region11: #{tpu_custom_call.1} parent=5 // pred_region
        %s124 = ssub.s32 %s16, 1
        // Predicated region
        $region13: #{tpu_custom_call.1} parent=11 // pred_check
          %p125 = pneg %p63
        $region14: #{tpu_custom_call.1} parent=11 // pred_check_branch
          %127 = sbr.rel (%p125) target = $region16
        $region15: #{tpu_custom_call.1} parent=11 // pred_region
          %129 = vsyncadd [#allocation6], 0
          %s130 = sshll.u32 %s1, 4
          %s131 = int_to_ptr.hbm [resolvable:$true] %s130
          %s132 = sshll.u32 [#allocation5], 4
          %s133 = int_to_ptr.vmem [resolvable:$true] %s132
          %138 = dma.hbm_to_vmem [thread:$0]  %s131, 512, %s133, [#allocation6], 128, 128, 8
        $region16: #{tpu_custom_call.1} parent=11 // pred_fallthru
          _
        // Predicated region
        $region17: #{tpu_custom_call.1} parent=11 // pred_check
          %p139 = pneg %p84
        $region18: #{tpu_custom_call.1} parent=11 // pred_check_branch
          %141 = sbr.rel (%p139) target = $region20
        $region19: #{tpu_custom_call.1} parent=11 // pred_region
          _
        $region20: #{tpu_custom_call.1} parent=11 // pred_fallthru
          _
      $region12: #{tpu_custom_call.1} parent=5 // pred_fallthru
        _
      %p142 = scmp.lt.s32.totalorder %s16, 2
      // Predicated region
      $region21: #{tpu_custom_call.1} parent=5 // pred_check
        %p143 = pneg %p142
      $region22: #{tpu_custom_call.1} parent=5 // pred_check_branch
        %145 = sbr.rel (%p143) target = $region24
      $region23: #{tpu_custom_call.1} parent=5 // pred_region
        // Predicated region
        $region25: #{tpu_custom_call.1} parent=23 // pred_check
          %p146 = pneg %p36
        $region26: #{tpu_custom_call.1} parent=23 // pred_check_branch
          %148 = sbr.rel (%p146) target = $region28
        $region27: #{tpu_custom_call.1} parent=23 // pred_region
          %s149 = sand.u32 %s26, 1
          %s150 = scalar_lea.sflag [#allocation3], %s149
          %s151 = sand.u32 %s26, 1
          %s152 = smul.addr %s151, 8
          %s153 = scalar_lea.vmem [#allocation2], %s152
          %155 = vsyncadd %s150, 0
          %s156 = smul.addr %s16, 8
          %s157 = scalar_lea.hbm %s0, %s156
          %s159 = sshll.u32 %s157, 4
          %s160 = int_to_ptr.hbm [resolvable:$true] %s159
          %s161 = sshll.u32 %s153, 4
          %s162 = int_to_ptr.vmem [resolvable:$true] %s161
          %164 = dma.hbm_to_vmem [thread:$0]  %s160, 128, %s162, %s150
        $region28: #{tpu_custom_call.1} parent=23 // pred_fallthru
          _
      $region24: #{tpu_custom_call.1} parent=5 // pred_fallthru
        _
      %p165 = scmp.le.s32.totalorder 1, %s16
      %p166 = scmp.lt.s32.totalorder %s16, 3
      %p167 = pnand %p165, %p166
      %p168 = pneg %p167
      // Predicated region
      $region29: #{tpu_custom_call.1} parent=5 // pred_check
        _
      $region30: #{tpu_custom_call.1} parent=5 // pred_check_branch
        %170 = sbr.rel (%p167) target = $region32
      $region31: #{tpu_custom_call.1} parent=5 // pred_region
        %s171 = ssub.s32 %s16, 1
        %s172 = sand.u32 %s29, 1
        %s173 = scalar_lea.sflag [#allocation3], %s172
        %s174 = sand.u32 %s29, 1
        %s175 = smul.addr %s174, 8
        %s176 = scalar_lea.vmem [#allocation2], %s175
        // Predicated region
        $region33: #{tpu_custom_call.1} parent=31 // pred_check
          %p177 = pneg %p42
        $region34: #{tpu_custom_call.1} parent=31 // pred_check_branch
          %179 = sbr.rel (%p177) target = $region36
        $region35: #{tpu_custom_call.1} parent=31 // pred_region
          %181 = dma.done %s173, 128
        $region36: #{tpu_custom_call.1} parent=31 // pred_fallthru
          _
        // Predicated region
        $region37: #{tpu_custom_call.1} parent=31 // pred_check
          %p182 = pneg %p63
        $region38: #{tpu_custom_call.1} parent=31 // pred_check_branch
          %184 = sbr.rel (%p182) target = $region40
        $region39: #{tpu_custom_call.1} parent=31 // pred_region
          %186 = dma.done [#allocation6], 512
        $region40: #{tpu_custom_call.1} parent=31 // pred_fallthru
          _
        %s187 = sand.u32 %s29, 1
        %s188 = scalar_lea.sflag [#allocation3], %s187
        %s189 = sand.u32 %s29, 1
        %s190 = smul.addr %s189, 8
        %s191 = scalar_lea.vmem [#allocation2], %s190
        %p192 = pneg %p42
        %p193 = pneg %p39
        %p194 = pneg %p63
        %p195 = pneg %p60
        %p196 = pneg %p84
        %p197 = pneg %p81
        %p198 = pneg %p110
        %p199 = pneg %p107
        %s200 = sand.u32 %s97, 1
        %s201 = scalar_lea.sflag [#allocation4], %s200
        %s202 = sand.u32 %s97, 1
        %s203 = smul.addr %s202, 16
        %s204 = scalar_lea.vmem [#allocation7], %s203
        %v205 = vld [vmem:[%s176] sm:$0xff]
        %v206 = vld [vmem:[#allocation5] sm:$0xff]
        %v207 = vld [vmem:[#allocation5 + $0x8] sm:$0xff]
        %v208 = vld [vmem:[#allocation5 + $0x10] sm:$0xff]
        %v209 = vld [vmem:[#allocation5 + $0x18] sm:$0xff]
        %v210 = vld [vmem:[%s2] sm:$0x1]
        %v212 = vperm.slane %v210, 0
        %vm214 = vcmask 261120
        %v216 = vsel %vm214, %v205, 0
        %218 = vmatpush.msra.mxu0 0.0
        %219 = vmatpush.msra.mxu0 0.0
        %220 = vmatpush.msra.mxu0 0.0
        %221 = vmatpush.msra.mxu0 0.0
        %222 = vmatpush.msra.mxu0 0.0
        %223 = vmatpush.msra.mxu0 0.0
        %224 = vmatpush.msra.mxu0 0.0
        %225 = vmatpush.msra.mxu0 0.0
        %226 = vmatpush.msra.mxu0 0.0
        %227 = vmatpush.msra.mxu0 0.0
        %228 = vmatpush.msra.mxu0 0.0
        %229 = vmatpush.msra.mxu0 0.0
        %230 = vmatpush.msra.mxu0 %v209
        %231 = vmatpush.msra.mxu0 %v208
        %232 = vmatpush.msra.mxu0 %v207
        %233 = vmatpush.msra.mxu0 %v206
        %234 = vmatmul.f32.gmra.mxu0 %v216
        %v235 = vpop.f32.mrf.mxu0
        %v236 = vadd.f32 %v212, %v235
        %237 = vdwg.mxu0
        %239 = vrot.lane.b32.xlu0 %v236, 112
        %v240 = vpop.permute.xlu0 %239
        %242 = vrot.lane.b32.xlu0 %v236, 96
        %v243 = vpop.permute.xlu0 %242
        %245 = vrot.lane.b32.xlu0 %v236, 80
        %v246 = vpop.permute.xlu0 %245
        %248 = vrot.lane.b32.xlu0 %v236, 64
        %v249 = vpop.permute.xlu0 %248
        %251 = vrot.lane.b32.xlu0 %v236, 48
        %v252 = vpop.permute.xlu0 %251
        %v254 = vrot.slane %v243, 4
        %vm255 = vcmask 1047556
        %v256 = vsel %vm255, %v254, %v236
        %v257 = vrot.slane %v236, 4
        %v258 = vsel %vm255, %v243, %v257
        %v260 = vunpack.c.l.s4 1983009808
        %v261 = vunpack.c.0.s8 %v260
        %v262 = vperm.slane %v256, %v261
        %v264 = vunpack.c.l.s4 1983009808
        %v265 = vunpack.c.0.s8 %v264
        %v266 = vperm.slane %v258, %v265
        %v267 = vrot.slane %v246, 4
        %v268 = vsel %vm255, %v267, %v240
        %v269 = vrot.slane %v240, 4
        %v270 = vsel %vm255, %v246, %v269
        %v272 = vunpack.c.l.s4 1983009808
        %v273 = vunpack.c.0.s8 %v272
        %v274 = vperm.slane %v268, %v273
        %v276 = vunpack.c.l.s4 1983009808
        %v277 = vunpack.c.0.s8 %v276
        %v278 = vperm.slane %v270, %v277
        %v279 = vrot.slane %v249, 4
        %v280 = vsel %vm255, 0.0, %v279
        %v282 = vunpack.c.l.s4 1983009808
        %v283 = vunpack.c.0.s8 %v282
        %v284 = vperm.slane %v249, %v283
        %v286 = vunpack.c.l.s4 1983009808
        %v287 = vunpack.c.0.s8 %v286
        %v288 = vperm.slane %v280, %v287
        %v289 = vrot.slane %v252, 4
        %v290 = vsel %vm255, 0.0, %v289
        %v292 = vunpack.c.l.s4 1983009808
        %v293 = vunpack.c.0.s8 %v292
        %v294 = vperm.slane %v252, %v293
        %v296 = vunpack.c.l.s4 1983009808
        %v297 = vunpack.c.0.s8 %v296
        %v298 = vperm.slane %v290, %v297
        %v299 = vrot.slane %v274, 4
        %v300 = vsel %vm255, %v299, %v262
        %v301 = vrot.slane %v262, 4
        %v302 = vsel %vm255, %v274, %v301
        %v304 = vunpack.c.l.s4 1934713408
        %v305 = vunpack.c.0.s8 %v304
        %v306 = vperm.slane %v300, %v305
        %v308 = vunpack.c.l.s4 1934713408
        %v309 = vunpack.c.0.s8 %v308
        %v310 = vperm.slane %v302, %v309
        %v311 = vrot.slane %v278, 4
        %v312 = vsel %vm255, %v311, %v266
        %v313 = vrot.slane %v266, 4
        %v314 = vsel %vm255, %v278, %v313
        %v316 = vunpack.c.l.s4 1934713408
        %v317 = vunpack.c.0.s8 %v316
        %v318 = vperm.slane %v312, %v317
        %v320 = vunpack.c.l.s4 1934713408
        %v321 = vunpack.c.0.s8 %v320
        %v322 = vperm.slane %v314, %v321
        %v323 = vrot.slane %v294, 4
        %v324 = vsel %vm255, %v323, %v284
        %v325 = vrot.slane %v284, 4
        %v326 = vsel %vm255, %v294, %v325
        %v328 = vunpack.c.l.s4 1934713408
        %v329 = vunpack.c.0.s8 %v328
        %v330 = vperm.slane %v324, %v329
        %v332 = vunpack.c.l.s4 1934713408
        %v333 = vunpack.c.0.s8 %v332
        %v334 = vperm.slane %v326, %v333
        %v335 = vrot.slane %v298, 4
        %v336 = vsel %vm255, %v335, %v288
        %v337 = vrot.slane %v288, 4
        %v338 = vsel %vm255, %v298, %v337
        %v340 = vunpack.c.l.s4 1934713408
        %v341 = vunpack.c.0.s8 %v340
        %v342 = vperm.slane %v336, %v341
        %v344 = vunpack.c.l.s4 1934713408
        %v345 = vunpack.c.0.s8 %v344
        %v346 = vperm.slane %v338, %v345
        %v347 = vrot.slane %v330, 4
        %v348 = vsel %vm255, %v347, %v306
        %v349 = vrot.slane %v306, 4
        %v350 = vsel %vm255, %v330, %v349
        %v351 = vrot.slane %v334, 4
        %v352 = vsel %vm255, %v351, %v310
        %v353 = vrot.slane %v310, 4
        %v354 = vsel %vm255, %v334, %v353
        %v355 = vrot.slane %v342, 4
        %v356 = vsel %vm255, %v355, %v318
        %v357 = vrot.slane %v318, 4
        %v358 = vsel %vm255, %v342, %v357
        %v359 = vrot.slane %v346, 4
        %v360 = vsel %vm255, %v359, %v322
        %v361 = vrot.slane %v322, 4
        %v362 = vsel %vm255, %v346, %v361
        %v363 = vrot.slane %v352, 4
        %v364 = vsel %vm255, %v363, %v348
        %v365 = vrot.slane %v348, 4
        %v366 = vsel %vm255, %v352, %v365
        %v368 = vunpack.c.l.s4 1983009808
        %v369 = vunpack.c.0.s8 %v368
        %v370 = vperm.slane %v364, %v369
        %v372 = vunpack.c.l.s4 1983009808
        %v373 = vunpack.c.0.s8 %v372
        %v374 = vperm.slane %v366, %v373
        %v375 = vrot.slane %v354, 4
        %v376 = vsel %vm255, %v375, %v350
        %v377 = vrot.slane %v350, 4
        %v378 = vsel %vm255, %v354, %v377
        %v380 = vunpack.c.l.s4 1983009808
        %v381 = vunpack.c.0.s8 %v380
        %v382 = vperm.slane %v376, %v381
        %v384 = vunpack.c.l.s4 1983009808
        %v385 = vunpack.c.0.s8 %v384
        %v386 = vperm.slane %v378, %v385
        %v387 = vrot.slane %v360, 4
        %v388 = vsel %vm255, %v387, %v356
        %v389 = vrot.slane %v356, 4
        %v390 = vsel %vm255, %v360, %v389
        %v392 = vunpack.c.l.s4 1983009808
        %v393 = vunpack.c.0.s8 %v392
        %v394 = vperm.slane %v388, %v393
        %v396 = vunpack.c.l.s4 1983009808
        %v397 = vunpack.c.0.s8 %v396
        %v398 = vperm.slane %v390, %v397
        %v399 = vrot.slane %v362, 4
        %v400 = vsel %vm255, %v399, %v358
        %v401 = vrot.slane %v358, 4
        %v402 = vsel %vm255, %v362, %v401
        %v404 = vunpack.c.l.s4 1983009808
        %v405 = vunpack.c.0.s8 %v404
        %v406 = vperm.slane %v400, %v405
        %v408 = vunpack.c.l.s4 1983009808
        %v409 = vunpack.c.0.s8 %v408
        %v410 = vperm.slane %v402, %v409
        %v411 = vrot.slane %v382, 4
        %v412 = vsel %vm255, %v411, %v370
        %v413 = vrot.slane %v370, 4
        %v414 = vsel %vm255, %v382, %v413
        %v416 = vunpack.c.l.s4 1934713408
        %v417 = vunpack.c.0.s8 %v416
        %v418 = vperm.slane %v412, %v417
        %v420 = vunpack.c.l.s4 1934713408
        %v421 = vunpack.c.0.s8 %v420
        %v422 = vperm.slane %v414, %v421
        %v423 = vrot.slane %v386, 4
        %v424 = vsel %vm255, %v423, %v374
        %v426 = vunpack.c.l.s4 1934713408
        %v427 = vunpack.c.0.s8 %v426
        %v428 = vperm.slane %v424, %v427
        %v429 = vrot.slane %v406, 4
        %v430 = vsel %vm255, %v429, %v394
        %v431 = vrot.slane %v394, 4
        %v432 = vsel %vm255, %v406, %v431
        %v434 = vunpack.c.l.s4 1934713408
        %v435 = vunpack.c.0.s8 %v434
        %v436 = vperm.slane %v430, %v435
        %v438 = vunpack.c.l.s4 1934713408
        %v439 = vunpack.c.0.s8 %v438
        %v440 = vperm.slane %v432, %v439
        %v441 = vrot.slane %v410, 4
        %v442 = vsel %vm255, %v441, %v398
        %v444 = vunpack.c.l.s4 1934713408
        %v445 = vunpack.c.0.s8 %v444
        %v446 = vperm.slane %v442, %v445
        %v447 = vrot.slane %v436, 4
        %v448 = vsel %vm255, %v447, %v418
        %v449 = vrot.slane %v418, 4
        %v450 = vsel %vm255, %v436, %v449
        %v451 = vrot.slane %v440, 4
        %v452 = vsel %vm255, %v451, %v422
        %v453 = vrot.slane %v422, 4
        %v454 = vsel %vm255, %v440, %v453
        %v455 = vrot.slane %v446, 4
        %v456 = vsel %vm255, %v455, %v428
        %v457 = vrot.slane %v428, 4
        %v458 = vsel %vm255, %v446, %v457
        %vm459 = vcmask 130048
        %v461 = vsel %vm459, %v448, 0
        %v464 = vsel %vm459, %v452, 0
        %466 = vmatpush.xpose.msra.mxu0 0.0
        %467 = vmatpush.xpose.msra.mxu0 0.0
        %468 = vmatpush.xpose.msra.mxu0 0.0
        %469 = vmatpush.xpose.msra.mxu0 0.0
        %470 = vmatpush.xpose.msra.mxu0 0.0
        %471 = vmatpush.xpose.msra.mxu0 0.0
        %472 = vmatpush.xpose.msra.mxu0 0.0
        %473 = vmatpush.xpose.msra.mxu0 0.0
        %474 = vmatpush.xpose.msra.mxu0 0.0
        %475 = vmatpush.xpose.msra.mxu0 0.0
        %476 = vmatpush.xpose.msra.mxu0 0.0
        %477 = vmatpush.xpose.msra.mxu0 0.0
        %478 = vmatpush.xpose.msra.mxu0 0.0
        %479 = vmatpush.xpose.msra.mxu0 0.0
        %480 = vmatpush.xpose.msra.mxu0 0.0
        %481 = vmatpush.xpose.msra.mxu0 %v464
        %482 = vmatmul.f32.gmra.mxu0 %v461
        %v483 = vpop.f32.mrf.mxu0
        %v484 = vadd.f32 0.0, %v483
        %485 = vdwg.mxu0
        %v487 = vsel %vm459, %v450, 0
        %v490 = vsel %vm459, %v454, 0
        %492 = vmatpush.xpose.msra.mxu0 0.0
        %493 = vmatpush.xpose.msra.mxu0 0.0
        %494 = vmatpush.xpose.msra.mxu0 0.0
        %495 = vmatpush.xpose.msra.mxu0 0.0
        %496 = vmatpush.xpose.msra.mxu0 0.0
        %497 = vmatpush.xpose.msra.mxu0 0.0
        %498 = vmatpush.xpose.msra.mxu0 0.0
        %499 = vmatpush.xpose.msra.mxu0 0.0
        %500 = vmatpush.xpose.msra.mxu0 0.0
        %501 = vmatpush.xpose.msra.mxu0 0.0
        %502 = vmatpush.xpose.msra.mxu0 0.0
        %503 = vmatpush.xpose.msra.mxu0 0.0
        %504 = vmatpush.xpose.msra.mxu0 0.0
        %505 = vmatpush.xpose.msra.mxu0 0.0
        %506 = vmatpush.xpose.msra.mxu0 0.0
        %507 = vmatpush.xpose.msra.mxu0 %v490
        %508 = vmatmul.f32.gmra.mxu0 %v487
        %v509 = vpop.f32.mrf.mxu0
        %v510 = vadd.f32 0.0, %v509
        %511 = vdwg.mxu0
        %vm512 = vcmask 64512
        %v513 = vsel %vm512, %v484, -inf
        %514 = vmax.xlane.f32.xlu0 %v513
        %v515 = vpop.xlane.xlu0 %514
        %v516 = vsel %vm512, %v510, -inf
        %517 = vmax.xlane.f32.xlu0 %v516
        %v518 = vpop.xlane.xlu0 %517
        %v519 = vsub.f32 %v484, %v515
        %v520 = vsub.f32 %v510, %v518
        %v521 = vmul.f32 %v519, 1.442695
        %v522 = vpow.pop %v521
        %v523 = vmul.f32 %v520, 1.442695
        %v524 = vpow.pop %v523
        %v525 = vsel %vm512, %v522, 0.0
        %526 = vadd.xlane.f32.xlu0 %v525
        %v527 = vpop.xlane.xlu0 %526
        %v528 = vsel %vm512, %v524, 0.0
        %529 = vadd.xlane.f32.xlu0 %v528
        %v530 = vpop.xlane.xlu0 %529
        %v532 = vsel %vm512, %v522, 0
        %534 = vmatpush.msra.mxu0 0.0
        %535 = vmatpush.msra.mxu0 0.0
        %536 = vmatpush.msra.mxu0 0.0
        %537 = vmatpush.msra.mxu0 0.0
        %538 = vmatpush.msra.mxu0 0.0
        %539 = vmatpush.msra.mxu0 0.0
        %540 = vmatpush.msra.mxu0 0.0
        %541 = vmatpush.msra.mxu0 0.0
        %542 = vmatpush.msra.mxu0 0.0
        %543 = vmatpush.msra.mxu0 0.0
        %544 = vmatpush.msra.mxu0 0.0
        %545 = vmatpush.msra.mxu0 0.0
        %546 = vmatpush.msra.mxu0 0.0
        %547 = vmatpush.msra.mxu0 0.0
        %548 = vmatpush.msra.mxu0 0.0
        %549 = vmatpush.msra.mxu0 %v456
        %550 = vmatmul.f32.gmra.mxu0 %v532
        %v551 = vpop.f32.mrf.mxu0
        %v552 = vadd.f32 0.0, %v551
        %553 = vdwg.mxu0
        %v555 = vsel %vm512, %v524, 0
        %557 = vmatpush.msra.mxu0 0.0
        %558 = vmatpush.msra.mxu0 0.0
        %559 = vmatpush.msra.mxu0 0.0
        %560 = vmatpush.msra.mxu0 0.0
        %561 = vmatpush.msra.mxu0 0.0
        %562 = vmatpush.msra.mxu0 0.0
        %563 = vmatpush.msra.mxu0 0.0
        %564 = vmatpush.msra.mxu0 0.0
        %565 = vmatpush.msra.mxu0 0.0
        %566 = vmatpush.msra.mxu0 0.0
        %567 = vmatpush.msra.mxu0 0.0
        %568 = vmatpush.msra.mxu0 0.0
        %569 = vmatpush.msra.mxu0 0.0
        %570 = vmatpush.msra.mxu0 0.0
        %571 = vmatpush.msra.mxu0 0.0
        %572 = vmatpush.msra.mxu0 %v458
        %573 = vmatmul.f32.gmra.mxu0 %v555
        %v574 = vpop.f32.mrf.mxu0
        %v575 = vadd.f32 0.0, %v574
        %576 = vdwg.mxu0
        %v577 = vrcp.pop %v527
        %v578 = vmul.f32 %v527, %v577
        %v579 = vsub.f32 1.0, %v578
        %v580 = vmul.f32 %v577, %v579
        %v581 = vadd.f32 %v577, %v580
        %vm582 = vweird.f32 %v527
        %vm583 = vweird.f32 %v577
        %vm584 = vmor %vm582, %vm583
        %v585 = vsel %vm584, %v577, %v581
        %v586 = vand.u32 2147483647, %v527
        %vm587 = vcmp.eq.f32.partialorder %v586, 8.507059e+37
        %v588 = vand.u32 %v527, 2147483648
        %v589 = vor.u32 1.1754944e-38, %v588
        %v590 = vsel %vm587, %v589, %v585
        %v591 = vmul.f32 %v552, %v590
        %v592 = vrcp.pop %v530
        %v593 = vmul.f32 %v530, %v592
        %v594 = vsub.f32 1.0, %v593
        %v595 = vmul.f32 %v592, %v594
        %v596 = vadd.f32 %v592, %v595
        %vm597 = vweird.f32 %v530
        %vm598 = vweird.f32 %v592
        %vm599 = vmor %vm597, %vm598
        %v600 = vsel %vm599, %v592, %v596
        %v601 = vand.u32 2147483647, %v530
        %vm602 = vcmp.eq.f32.partialorder %v601, 8.507059e+37
        %v603 = vand.u32 %v530, 2147483648
        %v604 = vor.u32 1.1754944e-38, %v603
        %v605 = vsel %vm602, %v604, %v600
        %v606 = vmul.f32 %v575, %v605
        %v607 = vrot.slane %v591, 4
        %v608 = vsel %vm255, 0.0, %v607
        %v610 = vunpack.c.l.s4 1983009808
        %v611 = vunpack.c.0.s8 %v610
        %v612 = vperm.slane %v591, %v611
        %v614 = vunpack.c.l.s4 1983009808
        %v615 = vunpack.c.0.s8 %v614
        %v616 = vperm.slane %v608, %v615
        %v617 = vrot.slane %v606, 4
        %v618 = vsel %vm255, 0.0, %v617
        %v620 = vunpack.c.l.s4 1983009808
        %v621 = vunpack.c.0.s8 %v620
        %v622 = vperm.slane %v606, %v621
        %v624 = vunpack.c.l.s4 1983009808
        %v625 = vunpack.c.0.s8 %v624
        %v626 = vperm.slane %v618, %v625
        %v627 = vrot.slane %v622, 4
        %v628 = vsel %vm255, %v627, %v612
        %v629 = vrot.slane %v612, 4
        %v630 = vsel %vm255, %v622, %v629
        %v632 = vunpack.c.l.s4 1934713408
        %v633 = vunpack.c.0.s8 %v632
        %v634 = vperm.slane %v628, %v633
        %v636 = vunpack.c.l.s4 1934713408
        %v637 = vunpack.c.0.s8 %v636
        %v638 = vperm.slane %v630, %v637
        %v639 = vrot.slane %v626, 4
        %v640 = vsel %vm255, %v639, %v616
        %v641 = vrot.slane %v616, 4
        %v642 = vsel %vm255, %v626, %v641
        %v644 = vunpack.c.l.s4 1934713408
        %v645 = vunpack.c.0.s8 %v644
        %v646 = vperm.slane %v640, %v645
        %v648 = vunpack.c.l.s4 1934713408
        %v649 = vunpack.c.0.s8 %v648
        %v650 = vperm.slane %v642, %v649
        %v651 = vrot.slane %v634, 4
        %v652 = vsel %vm255, 0.0, %v651
        %v653 = vrot.slane %v638, 4
        %v654 = vsel %vm255, 0.0, %v653
        %v655 = vrot.slane %v646, 4
        %v656 = vsel %vm255, 0.0, %v655
        %v657 = vrot.slane %v650, 4
        %v658 = vsel %vm255, 0.0, %v657
        %vm659 = vcmask 123904
        %660 = vst.msk [vmem:[%s204] sm:$0x3] %vm659, %v634
        %661 = vst.msk [vmem:[%s204 + $0x2] sm:$0x3] %vm659, %v652
        %662 = vst.msk [vmem:[%s204 + $0x4] sm:$0x3] %vm659, %v638
        %663 = vst.msk [vmem:[%s204 + $0x6] sm:$0x3] %vm659, %v654
        %664 = vst.msk [vmem:[%s204 + $0x8] sm:$0x3] %vm659, %v646
        %665 = vst.msk [vmem:[%s204 + $0xa] sm:$0x3] %vm659, %v656
        %666 = vst.msk [vmem:[%s204 + $0xc] sm:$0x3] %vm659, %v650
        %667 = vst.msk [vmem:[%s204 + $0xe] sm:$0x3] %vm659, %v658
        %s668 = sand.u32 %s97, 1
        %s669 = scalar_lea.sflag [#allocation4], %s668
        %s670 = sand.u32 %s97, 1
        %s671 = smul.addr %s670, 16
        %s672 = scalar_lea.vmem [#allocation7], %s671
        // Predicated region
        $region41: #{tpu_custom_call.1} parent=31 // pred_check
          %p673 = pneg %p107
        $region42: #{tpu_custom_call.1} parent=31 // pred_check_branch
          %675 = sbr.rel (%p673) target = $region44
        $region43: #{tpu_custom_call.1} parent=31 // pred_region
          %677 = vsyncadd %s669, 0
          %s678 = smul.addr %s21, 8
          %s679 = smul.addr %s678, 2
          %s680 = scalar_lea.hbm %s3, %s679
          %s681 = sshll.u32 %s672, 4
          %s682 = int_to_ptr.vmem [resolvable:$true] %s681
          %s683 = sshll.u32 %s680, 4
          %s684 = int_to_ptr.hbm [resolvable:$true] %s683
          %689 = dma.vmem_to_hbm [thread:$0]  %s682, 256, %s684, %s669, 32, 32, 2
        $region44: #{tpu_custom_call.1} parent=31 // pred_fallthru
          _
      $region32: #{tpu_custom_call.1} parent=5 // pred_fallthru
        _
      %p690 = scmp.le.s32.totalorder 2, %s16
      // Predicated region
      $region45: #{tpu_custom_call.1} parent=5 // pred_check
        %p691 = pneg %p690
      $region46: #{tpu_custom_call.1} parent=5 // pred_check_branch
        %693 = sbr.rel (%p691) target = $region48
      $region47: #{tpu_custom_call.1} parent=5 // pred_region
        %s694 = ssub.s32 %s16, 2
        // Predicated region
        $region49: #{tpu_custom_call.1} parent=47 // pred_check
          %p695 = pneg %p113
        $region50: #{tpu_custom_call.1} parent=47 // pred_check_branch
          %697 = sbr.rel (%p695) target = $region52
        $region51: #{tpu_custom_call.1} parent=47 // pred_region
          %s698 = sand.u32 %s98, 1
          %s699 = scalar_lea.sflag [#allocation4], %s698
          %s700 = sand.u32 %s98, 1
          %s701 = smul.addr %s700, 16
          %s702 = scalar_lea.vmem [#allocation7], %s701
          %704 = dma.done %s699, 256
        $region52: #{tpu_custom_call.1} parent=47 // pred_fallthru
          _
      $region48: #{tpu_custom_call.1} parent=5 // pred_fallthru
        _
    $region6: #{tpu_custom_call.1} parent=1 // loop_footer
      %s20 = sadd.s32 1, %s16
    $region7: #{tpu_custom_call.1} parent=1 // loop_footer_branch
      %15 = sbr.rel target = $region3
    $region8: #{tpu_custom_call.1} parent=1 // loop_exit
      _
    %705 = vsyncpa [#allocation3], 1
    %s706 = scalar_lea.sflag [#allocation3], 1
    %707 = vsyncpa %s706, 1
    %708 = vsyncpa [#allocation6], 1
    %709 = vsyncpa [#allocation4], 1
    %s710 = scalar_lea.sflag [#allocation4], 1
    %711 = vsyncpa %s710, 1

// kernel: tpu_custom_call.1
$region0: #{tpu_custom_call.1}
  #allocation0 [shape = 'u32[]', space=smem, size = 0x4, offset = 0x4, fixed_abs, tag = 'smem constant byte address 0x4 - core index']
  #allocation1 [shape = 'u32[72,128]{1,0:T(1,128)}', space=vmem, size = 0x9000, scoped, tag = 'internal scratch']
  %s0 = inlined_call_operand.hbm [shape: f32[2,8,32], index: 0, kind: input, shape index: {}]
  %s1 = inlined_call_operand.hbm [shape: f32[32,96], index: 1, kind: input, shape index: {}]
  %s2 = inlined_call_operand.vmem [shape: f32[1,96], index: 2, kind: input, shape index: {}]
  %s3 = inlined_call_operand.hbm [shape: f32[2,8,2,16], index: 3, kind: output, shape index: {}]
  %s4 = sld [smem:[#allocation0]]
  $region53: #{tpu_custom_call.1} parent=0
    _
  %s6 = ssub.s32 1, %s4
  %s7 = scalar_select 0, %s6, %s4
  $region1: #{tpu_custom_call.1} parent=0
    #allocation2 [shape = 'u8[8192]{0}', space=vmem, size = 0x2000, scoped, tag = 'input window, operand 0']
    #allocation3 [shape = 's32[2]{0}', space=sflag, size = 0x8, scoped, tag = 'scoped memory for tpu_custom_call.1']
    #allocation4 [shape = 's32[2]{0}', space=sflag, size = 0x8, scoped, tag = 'scoped memory for tpu_custom_call.1']
    #allocation5 [shape = 'u8[16384]{0}', space=vmem, size = 0x4000, scoped, tag = 'input window, operand 1, single buffered']
    #allocation6 [shape = 's32[1]{0}', space=sflag, size = 0x4, scoped, tag = 'scoped memory for tpu_custom_call.1']
    #allocation7 [shape = 'u8[16384]{0}', space=vmem, size = 0x4000, scoped, tag = 'output window, operand 0']
    %8 = vsyncpa [#allocation3], 0
    %s9 = scalar_lea.sflag [#allocation3], 1
    %10 = vsyncpa %s9, 0
    %11 = vsyncpa [#allocation6], 0
    %12 = vsyncpa [#allocation4], 0
    %s13 = scalar_lea.sflag [#allocation4], 1
    %14 = vsyncpa %s13, 0
    loop: start=0, step=1, limit=4
    $region2: #{tpu_custom_call.1} parent=1 // loop_pre_header
      _
    $region3: #{tpu_custom_call.1} parent=1 // loop_header
      %s16 = sphi 0, %s20
      %p17 = scmp.ge.s32.totalorder %s16, 4
      %s26 = sphi 0, %s28
      %s29 = sphi 0, %s26
      %s30 = sphi 0, %s29
      %s46 = sphi 0, %s30
      %s50 = sphi 0, %s50
      %s52 = sphi 0, %s50
      %s53 = sphi 0, %s52
      %s67 = sphi 0, %s53
      %s71 = sphi 0, %s71
      %s73 = sphi 0, %s71
      %s74 = sphi 0, %s73
      %s88 = sphi 0, %s74
      %s94 = sphi 0, %s96
      %s97 = sphi 0, %s94
      %s98 = sphi 0, %s97
      %s114 = sphi 0, %s98
    $region4: #{tpu_custom_call.1} parent=1 // loop_header_branch
      %19 = sbr.rel (%p17) target = $region8
    $region5: #{tpu_custom_call.1} parent=1 // loop_body
      %s21 = ssub.s32 %s16, 1
      %s22 = ssub.s32 %s16, 2
      %s23 = sadd.s32 %s16, 1
      %s24 = ssub.s32 %s16, %s23
      %p25 = scmp.eq.s32.totalorder %s24, 0
      %s27 = sadd.s32 %s26, 1
      %s28 = scalar_select %p25, %s26, %s27
      %p31 = pneg %p25
      %p32 = scmp.eq.s32.totalorder %s16, 1
      %p33 = por %p31, %p32
      %p34 = scmp.ne.s32.totalorder %s26, %s29
      %p35 = scmp.eq.s32.totalorder %s16, 0
      %p36 = por %p34, %p35
      %p37 = scmp.ne.s32.totalorder %s26, %s29
      %p38 = scmp.eq.s32.totalorder %s21, 1
      %p39 = por %p37, %p38
      %p40 = scmp.ne.s32.totalorder %s29, %s30
      %p41 = scmp.eq.s32.totalorder %s21, 0
      %p42 = por %p40, %p41
      %p43 = scmp.ne.s32.totalorder %s29, %s30
      %p44 = scmp.eq.s32.totalorder %s22, 1
      %p45 = por %p43, %p44
      %p47 = scmp.ne.s32.totalorder %s30, %s46
      %p48 = scmp.eq.s32.totalorder %s22, 0
      %p49 = por %p47, %p48
      %s51 = sadd.s32 %s50, 1
      %p54 = scmp.eq.s32.totalorder %s16, 1
      %p55 = scmp.ne.s32.totalorder %s50, %s52
      %p56 = scmp.eq.s32.totalorder %s16, 0
      %p57 = por %p55, %p56
      %p58 = scmp.ne.s32.totalorder %s50, %s52
      %p59 = scmp.eq.s32.totalorder %s21, 1
      %p60 = por %p58, %p59
      %p61 = scmp.ne.s32.totalorder %s52, %s53
      %p62 = scmp.eq.s32.totalorder %s21, 0
      %p63 = por %p61, %p62
      %p64 = scmp.ne.s32.totalorder %s52, %s53
      %p65 = scmp.eq.s32.totalorder %s22, 1
      %p66 = por %p64, %p65
      %p68 = scmp.ne.s32.totalorder %s53, %s67
      %p69 = scmp.eq.s32.totalorder %s22, 0
      %p70 = por %p68, %p69
      %s72 = sadd.s32 %s71, 1
      %p75 = scmp.eq.s32.totalorder %s16, 1
      %p76 = scmp.ne.s32.totalorder %s71, %s73
      %p77 = scmp.eq.s32.totalorder %s16, 0
      %p78 = por %p76, %p77
      %p79 = scmp.ne.s32.totalorder %s71, %s73
      %p80 = scmp.eq.s32.totalorder %s21, 1
      %p81 = por %p79, %p80
      %p82 = scmp.ne.s32.totalorder %s73, %s74
      %p83 = scmp.eq.s32.totalorder %s21, 0
      %p84 = por %p82, %p83
      %p85 = scmp.ne.s32.totalorder %s73, %s74
      %p86 = scmp.eq.s32.totalorder %s22, 1
      %p87 = por %p85, %p86
      %p89 = scmp.ne.s32.totalorder %s74, %s88
      %p90 = scmp.eq.s32.totalorder %s22, 0
      %p91 = por %p89, %p90
      %s92 = ssub.s32 %s16, %s23
      %p93 = scmp.eq.s32.totalorder %s92, 0
      %s95 = sadd.s32 %s94, 1
      %s96 = scalar_select %p93, %s94, %s95
      %p99 = pneg %p93
      %p100 = scmp.eq.s32.totalorder %s16, 1
      %p101 = por %p99, %p100
      %p102 = scmp.ne.s32.totalorder %s94, %s97
      %p103 = scmp.eq.s32.totalorder %s16, 0
      %p104 = por %p102, %p103
      %p105 = scmp.ne.s32.totalorder %s94, %s97
      %p106 = scmp.eq.s32.totalorder %s21, 1
      %p107 = por %p105, %p106
      %p108 = scmp.ne.s32.totalorder %s97, %s98
      %p109 = scmp.eq.s32.totalorder %s21, 0
      %p110 = por %p108, %p109
      %p111 = scmp.ne.s32.totalorder %s97, %s98
      %p112 = scmp.eq.s32.totalorder %s22, 1
      %p113 = por %p111, %p112
      %p115 = scmp.ne.s32.totalorder %s98, %s114
      %p116 = scmp.eq.s32.totalorder %s22, 0
      %p117 = por %p115, %p116
      %p118 = scmp.le.s32.totalorder 1, %s16
      %p119 = scmp.lt.s32.totalorder %s16, 3
      %p120 = pnand %p118, %p119
      %p121 = pneg %p120
      // Predicated region
      $region9: #{tpu_custom_call.1} parent=5 // pred_check
        _
      $region10: #{tpu_custom_call.1} parent=5 // pred_check_branch
        %123 = sbr.rel (%p120) target = $region12
      $region11: #{tpu_custom_call.1} parent=5 // pred_region
        %s124 = ssub.s32 %s16, 1
        // Predicated region
        $region13: #{tpu_custom_call.1} parent=11 // pred_check
          %p125 = pneg %p63
        $region14: #{tpu_custom_call.1} parent=11 // pred_check_branch
          %127 = sbr.rel (%p125) target = $region16
        $region15: #{tpu_custom_call.1} parent=11 // pred_region
          %129 = vsyncadd [#allocation6], 0
          %s130 = sshll.u32 %s1, 4
          %s131 = int_to_ptr.hbm [resolvable:$true] %s130
          %s132 = sshll.u32 [#allocation5], 4
          %s133 = int_to_ptr.vmem [resolvable:$true] %s132
          %138 = dma.hbm_to_vmem [thread:$0]  %s131, 512, %s133, [#allocation6], 128, 128, 8
        $region16: #{tpu_custom_call.1} parent=11 // pred_fallthru
          _
        // Predicated region
        $region17: #{tpu_custom_call.1} parent=11 // pred_check
          %p139 = pneg %p84
        $region18: #{tpu_custom_call.1} parent=11 // pred_check_branch
          %141 = sbr.rel (%p139) target = $region20
        $region19: #{tpu_custom_call.1} parent=11 // pred_region
          _
        $region20: #{tpu_custom_call.1} parent=11 // pred_fallthru
          _
      $region12: #{tpu_custom_call.1} parent=5 // pred_fallthru
        _
      %p142 = scmp.lt.s32.totalorder %s16, 2
      // Predicated region
      $region21: #{tpu_custom_call.1} parent=5 // pred_check
        %p143 = pneg %p142
      $region22: #{tpu_custom_call.1} parent=5 // pred_check_branch
        %145 = sbr.rel (%p143) target = $region24
      $region23: #{tpu_custom_call.1} parent=5 // pred_region
        // Predicated region
        $region25: #{tpu_custom_call.1} parent=23 // pred_check
          %p146 = pneg %p36
        $region26: #{tpu_custom_call.1} parent=23 // pred_check_branch
          %148 = sbr.rel (%p146) target = $region28
        $region27: #{tpu_custom_call.1} parent=23 // pred_region
          %s149 = sand.u32 %s26, 1
          %s150 = scalar_lea.sflag [#allocation3], %s149
          %s151 = sand.u32 %s26, 1
          %s152 = smul.addr %s151, 8
          %s153 = scalar_lea.vmem [#allocation2], %s152
          %155 = vsyncadd %s150, 0
          %s156 = smul.addr %s16, 8
          %s157 = scalar_lea.hbm %s0, %s156
          %s159 = sshll.u32 %s157, 4
          %s160 = int_to_ptr.hbm [resolvable:$true] %s159
          %s161 = sshll.u32 %s153, 4
          %s162 = int_to_ptr.vmem [resolvable:$true] %s161
          %164 = dma.hbm_to_vmem [thread:$0]  %s160, 128, %s162, %s150
        $region28: #{tpu_custom_call.1} parent=23 // pred_fallthru
          _
      $region24: #{tpu_custom_call.1} parent=5 // pred_fallthru
        _
      %p165 = scmp.le.s32.totalorder 1, %s16
      %p166 = scmp.lt.s32.totalorder %s16, 3
      %p167 = pnand %p165, %p166
      %p168 = pneg %p167
      // Predicated region
      $region29: #{tpu_custom_call.1} parent=5 // pred_check
        _
      $region30: #{tpu_custom_call.1} parent=5 // pred_check_branch
        %170 = sbr.rel (%p167) target = $region32
      $region31: #{tpu_custom_call.1} parent=5 // pred_region
        %s171 = ssub.s32 %s16, 1
        %s172 = sand.u32 %s29, 1
        %s173 = scalar_lea.sflag [#allocation3], %s172
        %s174 = sand.u32 %s29, 1
        %s175 = smul.addr %s174, 8
        %s176 = scalar_lea.vmem [#allocation2], %s175
        // Predicated region
        $region33: #{tpu_custom_call.1} parent=31 // pred_check
          %p177 = pneg %p42
        $region34: #{tpu_custom_call.1} parent=31 // pred_check_branch
          %179 = sbr.rel (%p177) target = $region36
        $region35: #{tpu_custom_call.1} parent=31 // pred_region
          %181 = dma.done %s173, 128
        $region36: #{tpu_custom_call.1} parent=31 // pred_fallthru
          _
        // Predicated region
        $region37: #{tpu_custom_call.1} parent=31 // pred_check
          %p182 = pneg %p63
        $region38: #{tpu_custom_call.1} parent=31 // pred_check_branch
          %184 = sbr.rel (%p182) target = $region40
        $region39: #{tpu_custom_call.1} parent=31 // pred_region
          %186 = dma.done [#allocation6], 512
        $region40: #{tpu_custom_call.1} parent=31 // pred_fallthru
          _
        %s187 = sand.u32 %s29, 1
        %s188 = scalar_lea.sflag [#allocation3], %s187
        %s189 = sand.u32 %s29, 1
        %s190 = smul.addr %s189, 8
        %s191 = scalar_lea.vmem [#allocation2], %s190
        %p192 = pneg %p42
        %p193 = pneg %p39
        %p194 = pneg %p63
        %p195 = pneg %p60
        %p196 = pneg %p84
        %p197 = pneg %p81
        %p198 = pneg %p110
        %p199 = pneg %p107
        %s200 = sand.u32 %s97, 1
        %s201 = scalar_lea.sflag [#allocation4], %s200
        %s202 = sand.u32 %s97, 1
        %s203 = smul.addr %s202, 16
        %s204 = scalar_lea.vmem [#allocation7], %s203
        %v205 = vld [vmem:[%s176] sm:$0xff]
        %v206 = vld [vmem:[#allocation5] sm:$0xff]
        %v207 = vld [vmem:[#allocation5 + $0x8] sm:$0xff]
        %v208 = vld [vmem:[#allocation5 + $0x10] sm:$0xff]
        %v209 = vld [vmem:[#allocation5 + $0x18] sm:$0xff]
        %v210 = vld [vmem:[%s2] sm:$0x1]
        %v212 = vperm.slane %v210, 0
        %vm214 = vcmask 261120
        %v216 = vsel %vm214, %v205, 0
        %218 = vmatpush.msra.mxu0 0.0
        %219 = vmatpush.msra.mxu0 0.0
        %220 = vmatpush.msra.mxu0 0.0
        %221 = vmatpush.msra.mxu0 0.0
        %222 = vmatpush.msra.mxu0 0.0
        %223 = vmatpush.msra.mxu0 0.0
        %224 = vmatpush.msra.mxu0 0.0
        %225 = vmatpush.msra.mxu0 0.0
        %226 = vmatpush.msra.mxu0 0.0
        %227 = vmatpush.msra.mxu0 0.0
        %228 = vmatpush.msra.mxu0 0.0
        %229 = vmatpush.msra.mxu0 0.0
        %230 = vmatpush.msra.mxu0 %v209
        %231 = vmatpush.msra.mxu0 %v208
        %232 = vmatpush.msra.mxu0 %v207
        %233 = vmatpush.msra.mxu0 %v206
        %234 = vmatmul.f32.gmra.mxu0 %v216
        %v235 = vpop.f32.mrf.mxu0
        %v236 = vadd.f32 %v212, %v235
        %237 = vdwg.mxu0
        %239 = vrot.lane.b32.xlu0 %v236, 112
        %v240 = vpop.permute.xlu0 %239
        %242 = vrot.lane.b32.xlu0 %v236, 96
        %v243 = vpop.permute.xlu0 %242
        %245 = vrot.lane.b32.xlu0 %v236, 80
        %v246 = vpop.permute.xlu0 %245
        %248 = vrot.lane.b32.xlu0 %v236, 64
        %v249 = vpop.permute.xlu0 %248
        %251 = vrot.lane.b32.xlu0 %v236, 48
        %v252 = vpop.permute.xlu0 %251
        %v254 = vrot.slane %v243, 4
        %vm255 = vcmask 1047556
        %v256 = vsel %vm255, %v254, %v236
        %v257 = vrot.slane %v236, 4
        %v258 = vsel %vm255, %v243, %v257
        %v260 = vunpack.c.l.s4 1983009808
        %v261 = vunpack.c.0.s8 %v260
        %v262 = vperm.slane %v256, %v261
        %v264 = vunpack.c.l.s4 1983009808
        %v265 = vunpack.c.0.s8 %v264
        %v266 = vperm.slane %v258, %v265
        %v267 = vrot.slane %v246, 4
        %v268 = vsel %vm255, %v267, %v240
        %v269 = vrot.slane %v240, 4
        %v270 = vsel %vm255, %v246, %v269
        %v272 = vunpack.c.l.s4 1983009808
        %v273 = vunpack.c.0.s8 %v272
        %v274 = vperm.slane %v268, %v273
        %v276 = vunpack.c.l.s4 1983009808
        %v277 = vunpack.c.0.s8 %v276
        %v278 = vperm.slane %v270, %v277
        %v279 = vrot.slane %v249, 4
        %v280 = vsel %vm255, 0.0, %v279
        %v282 = vunpack.c.l.s4 1983009808
        %v283 = vunpack.c.0.s8 %v282
        %v284 = vperm.slane %v249, %v283
        %v286 = vunpack.c.l.s4 1983009808
        %v287 = vunpack.c.0.s8 %v286
        %v288 = vperm.slane %v280, %v287
        %v289 = vrot.slane %v252, 4
        %v290 = vsel %vm255, 0.0, %v289
        %v292 = vunpack.c.l.s4 1983009808
        %v293 = vunpack.c.0.s8 %v292
        %v294 = vperm.slane %v252, %v293
        %v296 = vunpack.c.l.s4 1983009808
        %v297 = vunpack.c.0.s8 %v296
        %v298 = vperm.slane %v290, %v297
        %v299 = vrot.slane %v274, 4
        %v300 = vsel %vm255, %v299, %v262
        %v301 = vrot.slane %v262, 4
        %v302 = vsel %vm255, %v274, %v301
        %v304 = vunpack.c.l.s4 1934713408
        %v305 = vunpack.c.0.s8 %v304
        %v306 = vperm.slane %v300, %v305
        %v308 = vunpack.c.l.s4 1934713408
        %v309 = vunpack.c.0.s8 %v308
        %v310 = vperm.slane %v302, %v309
        %v311 = vrot.slane %v278, 4
        %v312 = vsel %vm255, %v311, %v266
        %v313 = vrot.slane %v266, 4
        %v314 = vsel %vm255, %v278, %v313
        %v316 = vunpack.c.l.s4 1934713408
        %v317 = vunpack.c.0.s8 %v316
        %v318 = vperm.slane %v312, %v317
        %v320 = vunpack.c.l.s4 1934713408
        %v321 = vunpack.c.0.s8 %v320
        %v322 = vperm.slane %v314, %v321
        %v323 = vrot.slane %v294, 4
        %v324 = vsel %vm255, %v323, %v284
        %v325 = vrot.slane %v284, 4
        %v326 = vsel %vm255, %v294, %v325
        %v328 = vunpack.c.l.s4 1934713408
        %v329 = vunpack.c.0.s8 %v328
        %v330 = vperm.slane %v324, %v329
        %v332 = vunpack.c.l.s4 1934713408
        %v333 = vunpack.c.0.s8 %v332
        %v334 = vperm.slane %v326, %v333
        %v335 = vrot.slane %v298, 4
        %v336 = vsel %vm255, %v335, %v288
        %v337 = vrot.slane %v288, 4
        %v338 = vsel %vm255, %v298, %v337
        %v340 = vunpack.c.l.s4 1934713408
        %v341 = vunpack.c.0.s8 %v340
        %v342 = vperm.slane %v336, %v341
        %v344 = vunpack.c.l.s4 1934713408
        %v345 = vunpack.c.0.s8 %v344
        %v346 = vperm.slane %v338, %v345
        %v347 = vrot.slane %v330, 4
        %v348 = vsel %vm255, %v347, %v306
        %v349 = vrot.slane %v306, 4
        %v350 = vsel %vm255, %v330, %v349
        %v351 = vrot.slane %v334, 4
        %v352 = vsel %vm255, %v351, %v310
        %v353 = vrot.slane %v310, 4
        %v354 = vsel %vm255, %v334, %v353
        %v355 = vrot.slane %v342, 4
        %v356 = vsel %vm255, %v355, %v318
        %v357 = vrot.slane %v318, 4
        %v358 = vsel %vm255, %v342, %v357
        %v359 = vrot.slane %v346, 4
        %v360 = vsel %vm255, %v359, %v322
        %v361 = vrot.slane %v322, 4
        %v362 = vsel %vm255, %v346, %v361
        %v363 = vrot.slane %v352, 4
        %v364 = vsel %vm255, %v363, %v348
        %v365 = vrot.slane %v348, 4
        %v366 = vsel %vm255, %v352, %v365
        %v368 = vunpack.c.l.s4 1983009808
        %v369 = vunpack.c.0.s8 %v368
        %v370 = vperm.slane %v364, %v369
        %v372 = vunpack.c.l.s4 1983009808
        %v373 = vunpack.c.0.s8 %v372
        %v374 = vperm.slane %v366, %v373
        %v375 = vrot.slane %v354, 4
        %v376 = vsel %vm255, %v375, %v350
        %v377 = vrot.slane %v350, 4
        %v378 = vsel %vm255, %v354, %v377
        %v380 = vunpack.c.l.s4 1983009808
        %v381 = vunpack.c.0.s8 %v380
        %v382 = vperm.slane %v376, %v381
        %v384 = vunpack.c.l.s4 1983009808
        %v385 = vunpack.c.0.s8 %v384
        %v386 = vperm.slane %v378, %v385
        %v387 = vrot.slane %v360, 4
        %v388 = vsel %vm255, %v387, %v356
        %v389 = vrot.slane %v356, 4
        %v390 = vsel %vm255, %v360, %v389
        %v392 = vunpack.c.l.s4 1983009808
        %v393 = vunpack.c.0.s8 %v392
        %v394 = vperm.slane %v388, %v393
        %v396 = vunpack.c.l.s4 1983009808
        %v397 = vunpack.c.0.s8 %v396
        %v398 = vperm.slane %v390, %v397
        %v399 = vrot.slane %v362, 4
        %v400 = vsel %vm255, %v399, %v358
        %v401 = vrot.slane %v358, 4
        %v402 = vsel %vm255, %v362, %v401
        %v404 = vunpack.c.l.s4 1983009808
        %v405 = vunpack.c.0.s8 %v404
        %v406 = vperm.slane %v400, %v405
        %v408 = vunpack.c.l.s4 1983009808
        %v409 = vunpack.c.0.s8 %v408
        %v410 = vperm.slane %v402, %v409
        %v411 = vrot.slane %v382, 4
        %v412 = vsel %vm255, %v411, %v370
        %v413 = vrot.slane %v370, 4
        %v414 = vsel %vm255, %v382, %v413
        %v416 = vunpack.c.l.s4 1934713408
        %v417 = vunpack.c.0.s8 %v416
        %v418 = vperm.slane %v412, %v417
        %v420 = vunpack.c.l.s4 1934713408
        %v421 = vunpack.c.0.s8 %v420
        %v422 = vperm.slane %v414, %v421
        %v423 = vrot.slane %v386, 4
        %v424 = vsel %vm255, %v423, %v374
        %v426 = vunpack.c.l.s4 1934713408
        %v427 = vunpack.c.0.s8 %v426
        %v428 = vperm.slane %v424, %v427
        %v429 = vrot.slane %v406, 4
        %v430 = vsel %vm255, %v429, %v394
        %v431 = vrot.slane %v394, 4
        %v432 = vsel %vm255, %v406, %v431
        %v434 = vunpack.c.l.s4 1934713408
        %v435 = vunpack.c.0.s8 %v434
        %v436 = vperm.slane %v430, %v435
        %v438 = vunpack.c.l.s4 1934713408
        %v439 = vunpack.c.0.s8 %v438
        %v440 = vperm.slane %v432, %v439
        %v441 = vrot.slane %v410, 4
        %v442 = vsel %vm255, %v441, %v398
        %v444 = vunpack.c.l.s4 1934713408
        %v445 = vunpack.c.0.s8 %v444
        %v446 = vperm.slane %v442, %v445
        %v447 = vrot.slane %v436, 4
        %v448 = vsel %vm255, %v447, %v418
        %v449 = vrot.slane %v418, 4
        %v450 = vsel %vm255, %v436, %v449
        %v451 = vrot.slane %v440, 4
        %v452 = vsel %vm255, %v451, %v422
        %v453 = vrot.slane %v422, 4
        %v454 = vsel %vm255, %v440, %v453
        %v455 = vrot.slane %v446, 4
        %v456 = vsel %vm255, %v455, %v428
        %v457 = vrot.slane %v428, 4
        %v458 = vsel %vm255, %v446, %v457
        %vm459 = vcmask 130048
        %v461 = vsel %vm459, %v448, 0
        %v464 = vsel %vm459, %v452, 0
        %466 = vmatpush.xpose.msra.mxu0 0.0
        %467 = vmatpush.xpose.msra.mxu0 0.0
        %468 = vmatpush.xpose.msra.mxu0 0.0
        %469 = vmatpush.xpose.msra.mxu0 0.0
        %470 = vmatpush.xpose.msra.mxu0 0.0
        %471 = vmatpush.xpose.msra.mxu0 0.0
        %472 = vmatpush.xpose.msra.mxu0 0.0
        %473 = vmatpush.xpose.msra.mxu0 0.0
        %474 = vmatpush.xpose.msra.mxu0 0.0
        %475 = vmatpush.xpose.msra.mxu0 0.0
        %476 = vmatpush.xpose.msra.mxu0 0.0
        %477 = vmatpush.xpose.msra.mxu0 0.0
        %478 = vmatpush.xpose.msra.mxu0 0.0
        %479 = vmatpush.xpose.msra.mxu0 0.0
        %480 = vmatpush.xpose.msra.mxu0 0.0
        %481 = vmatpush.xpose.msra.mxu0 %v464
        %482 = vmatmul.f32.gmra.mxu0 %v461
        %v483 = vpop.f32.mrf.mxu0
        %v484 = vadd.f32 0.0, %v483
        %485 = vdwg.mxu0
        %v487 = vsel %vm459, %v450, 0
        %v490 = vsel %vm459, %v454, 0
        %492 = vmatpush.xpose.msra.mxu0 0.0
        %493 = vmatpush.xpose.msra.mxu0 0.0
        %494 = vmatpush.xpose.msra.mxu0 0.0
        %495 = vmatpush.xpose.msra.mxu0 0.0
        %496 = vmatpush.xpose.msra.mxu0 0.0
        %497 = vmatpush.xpose.msra.mxu0 0.0
        %498 = vmatpush.xpose.msra.mxu0 0.0
        %499 = vmatpush.xpose.msra.mxu0 0.0
        %500 = vmatpush.xpose.msra.mxu0 0.0
        %501 = vmatpush.xpose.msra.mxu0 0.0
        %502 = vmatpush.xpose.msra.mxu0 0.0
        %503 = vmatpush.xpose.msra.mxu0 0.0
        %504 = vmatpush.xpose.msra.mxu0 0.0
        %505 = vmatpush.xpose.msra.mxu0 0.0
        %506 = vmatpush.xpose.msra.mxu0 0.0
        %507 = vmatpush.xpose.msra.mxu0 %v490
        %508 = vmatmul.f32.gmra.mxu0 %v487
        %v509 = vpop.f32.mrf.mxu0
        %v510 = vadd.f32 0.0, %v509
        %511 = vdwg.mxu0
        %vm512 = vcmask 64512
        %v513 = vsel %vm512, %v484, -inf
        %514 = vmax.xlane.f32.xlu0 %v513
        %v515 = vpop.xlane.xlu0 %514
        %v516 = vsel %vm512, %v510, -inf
        %517 = vmax.xlane.f32.xlu0 %v516
        %v518 = vpop.xlane.xlu0 %517
        %v519 = vsub.f32 %v484, %v515
        %v520 = vsub.f32 %v510, %v518
        %v521 = vmul.f32 %v519, 1.442695
        %v522 = vpow.pop %v521
        %v523 = vmul.f32 %v520, 1.442695
        %v524 = vpow.pop %v523
        %v525 = vsel %vm512, %v522, 0.0
        %526 = vadd.xlane.f32.xlu0 %v525
        %v527 = vpop.xlane.xlu0 %526
        %v528 = vsel %vm512, %v524, 0.0
        %529 = vadd.xlane.f32.xlu0 %v528
        %v530 = vpop.xlane.xlu0 %529
        %v532 = vsel %vm512, %v522, 0
        %534 = vmatpush.msra.mxu0 0.0
        %535 = vmatpush.msra.mxu0 0.0
        %536 = vmatpush.msra.mxu0 0.0
        %537 = vmatpush.msra.mxu0 0.0
        %538 = vmatpush.msra.mxu0 0.0
        %539 = vmatpush.msra.mxu0 0.0
        %540 = vmatpush.msra.mxu0 0.0
        %541 = vmatpush.msra.mxu0 0.0
        %542 = vmatpush.msra.mxu0 0.0
        %543 = vmatpush.msra.mxu0 0.0
        %544 = vmatpush.msra.mxu0 0.0
        %545 = vmatpush.msra.mxu0 0.0
        %546 = vmatpush.msra.mxu0 0.0
        %547 = vmatpush.msra.mxu0 0.0
        %548 = vmatpush.msra.mxu0 0.0
        %549 = vmatpush.msra.mxu0 %v456
        %550 = vmatmul.f32.gmra.mxu0 %v532
        %v551 = vpop.f32.mrf.mxu0
        %v552 = vadd.f32 0.0, %v551
        %553 = vdwg.mxu0
        %v555 = vsel %vm512, %v524, 0
        %557 = vmatpush.msra.mxu0 0.0
        %558 = vmatpush.msra.mxu0 0.0
        %559 = vmatpush.msra.mxu0 0.0
        %560 = vmatpush.msra.mxu0 0.0
        %561 = vmatpush.msra.mxu0 0.0
        %562 = vmatpush.msra.mxu0 0.0
        %563 = vmatpush.msra.mxu0 0.0
        %564 = vmatpush.msra.mxu0 0.0
        %565 = vmatpush.msra.mxu0 0.0
        %566 = vmatpush.msra.mxu0 0.0
        %567 = vmatpush.msra.mxu0 0.0
        %568 = vmatpush.msra.mxu0 0.0
        %569 = vmatpush.msra.mxu0 0.0
        %570 = vmatpush.msra.mxu0 0.0
        %571 = vmatpush.msra.mxu0 0.0
        %572 = vmatpush.msra.mxu0 %v458
        %573 = vmatmul.f32.gmra.mxu0 %v555
        %v574 = vpop.f32.mrf.mxu0
        %v575 = vadd.f32 0.0, %v574
        %576 = vdwg.mxu0
        %v577 = vrcp.pop %v527
        %v578 = vmul.f32 %v527, %v577
        %v579 = vsub.f32 1.0, %v578
        %v580 = vmul.f32 %v577, %v579
        %v581 = vadd.f32 %v577, %v580
        %vm582 = vweird.f32 %v527
        %vm583 = vweird.f32 %v577
        %vm584 = vmor %vm582, %vm583
        %v585 = vsel %vm584, %v577, %v581
        %v586 = vand.u32 2147483647, %v527
        %vm587 = vcmp.eq.f32.partialorder %v586, 8.507059e+37
        %v588 = vand.u32 %v527, 2147483648
        %v589 = vor.u32 1.1754944e-38, %v588
        %v590 = vsel %vm587, %v589, %v585
        %v591 = vmul.f32 %v552, %v590
        %v592 = vrcp.pop %v530
        %v593 = vmul.f32 %v530, %v592
        %v594 = vsub.f32 1.0, %v593
        %v595 = vmul.f32 %v592, %v594
        %v596 = vadd.f32 %v592, %v595
        %vm597 = vweird.f32 %v530
        %vm598 = vweird.f32 %v592
        %vm599 = vmor %vm597, %vm598
        %v600 = vsel %vm599, %v592, %v596
        %v601 = vand.u32 2147483647, %v530
        %vm602 = vcmp.eq.f32.partialorder %v601, 8.507059e+37
        %v603 = vand.u32 %v530, 2147483648
        %v604 = vor.u32 1.1754944e-38, %v603
        %v605 = vsel %vm602, %v604, %v600
        %v606 = vmul.f32 %v575, %v605
        %v607 = vrot.slane %v591, 4
        %v608 = vsel %vm255, 0.0, %v607
        %v610 = vunpack.c.l.s4 1983009808
        %v611 = vunpack.c.0.s8 %v610
        %v612 = vperm.slane %v591, %v611
        %v614 = vunpack.c.l.s4 1983009808
        %v615 = vunpack.c.0.s8 %v614
        %v616 = vperm.slane %v608, %v615
        %v617 = vrot.slane %v606, 4
        %v618 = vsel %vm255, 0.0, %v617
        %v620 = vunpack.c.l.s4 1983009808
        %v621 = vunpack.c.0.s8 %v620
        %v622 = vperm.slane %v606, %v621
        %v624 = vunpack.c.l.s4 1983009808
        %v625 = vunpack.c.0.s8 %v624
        %v626 = vperm.slane %v618, %v625
        %v627 = vrot.slane %v622, 4
        %v628 = vsel %vm255, %v627, %v612
        %v629 = vrot.slane %v612, 4
        %v630 = vsel %vm255, %v622, %v629
        %v632 = vunpack.c.l.s4 1934713408
        %v633 = vunpack.c.0.s8 %v632
        %v634 = vperm.slane %v628, %v633
        %v636 = vunpack.c.l.s4 1934713408
        %v637 = vunpack.c.0.s8 %v636
        %v638 = vperm.slane %v630, %v637
        %v639 = vrot.slane %v626, 4
        %v640 = vsel %vm255, %v639, %v616
        %v641 = vrot.slane %v616, 4
        %v642 = vsel %vm255, %v626, %v641
        %v644 = vunpack.c.l.s4 1934713408
        %v645 = vunpack.c.0.s8 %v644
        %v646 = vperm.slane %v640, %v645
        %v648 = vunpack.c.l.s4 1934713408
        %v649 = vunpack.c.0.s8 %v648
        %v650 = vperm.slane %v642, %v649
        %v651 = vrot.slane %v634, 4
        %v652 = vsel %vm255, 0.0, %v651
        %v653 = vrot.slane %v638, 4
        %v654 = vsel %vm255, 0.0, %v653
        %v655 = vrot.slane %v646, 4
        %v656 = vsel %vm255, 0.0, %v655
        %v657 = vrot.slane %v650, 4
        %v658 = vsel %vm255, 0.0, %v657
        %vm659 = vcmask 123904
        %660 = vst.msk [vmem:[%s204] sm:$0x3] %vm659, %v634
        %661 = vst.msk [vmem:[%s204 + $0x2] sm:$0x3] %vm659, %v652
        %662 = vst.msk [vmem:[%s204 + $0x4] sm:$0x3] %vm659, %v638
        %663 = vst.msk [vmem:[%s204 + $0x6] sm:$0x3] %vm659, %v654
        %664 = vst.msk [vmem:[%s204 + $0x8] sm:$0x3] %vm659, %v646
        %665 = vst.msk [vmem:[%s204 + $0xa] sm:$0x3] %vm659, %v656
        %666 = vst.msk [vmem:[%s204 + $0xc] sm:$0x3] %vm659, %v650
        %667 = vst.msk [vmem:[%s204 + $0xe] sm:$0x3] %vm659, %v658
        %s668 = sand.u32 %s97, 1
        %s669 = scalar_lea.sflag [#allocation4], %s668
        %s670 = sand.u32 %s97, 1
        %s671 = smul.addr %s670, 16
        %s672 = scalar_lea.vmem [#allocation7], %s671
        // Predicated region
        $region41: #{tpu_custom_call.1} parent=31 // pred_check
          %p673 = pneg %p107
        $region42: #{tpu_custom_call.1} parent=31 // pred_check_branch
          %675 = sbr.rel (%p673) target = $region44
        $region43: #{tpu_custom_call.1} parent=31 // pred_region
          %677 = vsyncadd %s669, 0
          %s678 = smul.addr %s21, 8
          %s679 = smul.addr %s678, 2
          %s680 = scalar_lea.hbm %s3, %s679
          %s681 = sshll.u32 %s672, 4
          %s682 = int_to_ptr.vmem [resolvable:$true] %s681
          %s683 = sshll.u32 %s680, 4
          %s684 = int_to_ptr.hbm [resolvable:$true] %s683
          %689 = dma.vmem_to_hbm [thread:$0]  %s682, 256, %s684, %s669, 32, 32, 2
        $region44: #{tpu_custom_call.1} parent=31 // pred_fallthru
          _
      $region32: #{tpu_custom_call.1} parent=5 // pred_fallthru
        _
      %p690 = scmp.le.s32.totalorder 2, %s16
      // Predicated region
      $region45: #{tpu_custom_call.1} parent=5 // pred_check
        %p691 = pneg %p690
      $region46: #{tpu_custom_call.1} parent=5 // pred_check_branch
        %693 = sbr.rel (%p691) target = $region48
      $region47: #{tpu_custom_call.1} parent=5 // pred_region
        %s694 = ssub.s32 %s16, 2
        // Predicated region
        $region49: #{tpu_custom_call.1} parent=47 // pred_check
          %p695 = pneg %p113
        $region50: #{tpu_custom_call.1} parent=47 // pred_check_branch
          %697 = sbr.rel (%p695) target = $region52
        $region51: #{tpu_custom_call.1} parent=47 // pred_region
          %s698 = sand.u32 %s98, 1
          %s699 = scalar_lea.sflag [#allocation4], %s698
          %s700 = sand.u32 %s98, 1
          %s701 = smul.addr %s700, 16
          %s702 = scalar_lea.vmem [#allocation7], %s701
          %704 = dma.done %s699, 256
        $region52: #{tpu_custom_call.1} parent=47 // pred_fallthru
          _
      $region48: #{tpu_custom_call.1} parent=5 // pred_fallthru
        _
    $region6: #{tpu_custom_call.1} parent=1 // loop_footer
      %s20 = sadd.s32 1, %s16
    $region7: #{tpu_custom_call.1} parent=1 // loop_footer_branch
      %15 = sbr.rel target = $region3
    $region8: #{tpu_custom_call.1} parent=1 // loop_exit
      _
    %705 = vsyncpa [#allocation3], 1
    %s706 = scalar_lea.sflag [#allocation3], 1
    %707 = vsyncpa %s706, 1
    %708 = vsyncpa [#allocation6], 1
    %709 = vsyncpa [#allocation4], 1
    %s710 = scalar_lea.sflag [#allocation4], 1
    %711 = vsyncpa %s710, 1

// kernel: tpu_custom_call.1
$region0: #{tpu_custom_call.1}
  #allocation0 [shape = 'u32[]', space=smem, size = 0x4, offset = 0x4, fixed_abs, tag = 'smem constant byte address 0x4 - core index']
  #allocation1 [shape = 'u32[72,128]{1,0:T(1,128)}', space=vmem, size = 0x9000, scoped, tag = 'internal scratch']
  %s0 = inlined_call_operand.hbm [shape: f32[2,8,32], index: 0, kind: input, shape index: {}]
  %s1 = inlined_call_operand.hbm [shape: f32[32,96], index: 1, kind: input, shape index: {}]
  %s2 = inlined_call_operand.vmem [shape: f32[1,96], index: 2, kind: input, shape index: {}]
  %s3 = inlined_call_operand.hbm [shape: f32[2,8,32], index: 3, kind: output, shape index: {}]
  %s4 = sld [smem:[#allocation0]]
  $region53: #{tpu_custom_call.1} parent=0
    _
  %s6 = ssub.s32 1, %s4
  %s7 = scalar_select 0, %s6, %s4
  $region1: #{tpu_custom_call.1} parent=0
    #allocation2 [shape = 'u8[8192]{0}', space=vmem, size = 0x2000, scoped, tag = 'input window, operand 0']
    #allocation3 [shape = 's32[2]{0}', space=sflag, size = 0x8, scoped, tag = 'scoped memory for tpu_custom_call.1']
    #allocation4 [shape = 's32[2]{0}', space=sflag, size = 0x8, scoped, tag = 'scoped memory for tpu_custom_call.1']
    #allocation5 [shape = 'u8[16384]{0}', space=vmem, size = 0x4000, scoped, tag = 'input window, operand 1, single buffered']
    #allocation6 [shape = 's32[1]{0}', space=sflag, size = 0x4, scoped, tag = 'scoped memory for tpu_custom_call.1']
    #allocation7 [shape = 'u8[8192]{0}', space=vmem, size = 0x2000, scoped, tag = 'output window, operand 0']
    %8 = vsyncpa [#allocation3], 0
    %s9 = scalar_lea.sflag [#allocation3], 1
    %10 = vsyncpa %s9, 0
    %11 = vsyncpa [#allocation6], 0
    %12 = vsyncpa [#allocation4], 0
    %s13 = scalar_lea.sflag [#allocation4], 1
    %14 = vsyncpa %s13, 0
    loop: start=0, step=1, limit=4
    $region2: #{tpu_custom_call.1} parent=1 // loop_pre_header
      _
    $region3: #{tpu_custom_call.1} parent=1 // loop_header
      %s16 = sphi 0, %s20
      %p17 = scmp.ge.s32.totalorder %s16, 4
      %s26 = sphi 0, %s28
      %s29 = sphi 0, %s26
      %s30 = sphi 0, %s29
      %s46 = sphi 0, %s30
      %s50 = sphi 0, %s50
      %s52 = sphi 0, %s50
      %s53 = sphi 0, %s52
      %s67 = sphi 0, %s53
      %s71 = sphi 0, %s71
      %s73 = sphi 0, %s71
      %s74 = sphi 0, %s73
      %s88 = sphi 0, %s74
      %s94 = sphi 0, %s96
      %s97 = sphi 0, %s94
      %s98 = sphi 0, %s97
      %s114 = sphi 0, %s98
    $region4: #{tpu_custom_call.1} parent=1 // loop_header_branch
      %19 = sbr.rel (%p17) target = $region8
    $region5: #{tpu_custom_call.1} parent=1 // loop_body
      %s21 = ssub.s32 %s16, 1
      %s22 = ssub.s32 %s16, 2
      %s23 = sadd.s32 %s16, 1
      %s24 = ssub.s32 %s16, %s23
      %p25 = scmp.eq.s32.totalorder %s24, 0
      %s27 = sadd.s32 %s26, 1
      %s28 = scalar_select %p25, %s26, %s27
      %p31 = pneg %p25
      %p32 = scmp.eq.s32.totalorder %s16, 1
      %p33 = por %p31, %p32
      %p34 = scmp.ne.s32.totalorder %s26, %s29
      %p35 = scmp.eq.s32.totalorder %s16, 0
      %p36 = por %p34, %p35
      %p37 = scmp.ne.s32.totalorder %s26, %s29
      %p38 = scmp.eq.s32.totalorder %s21, 1
      %p39 = por %p37, %p38
      %p40 = scmp.ne.s32.totalorder %s29, %s30
      %p41 = scmp.eq.s32.totalorder %s21, 0
      %p42 = por %p40, %p41
      %p43 = scmp.ne.s32.totalorder %s29, %s30
      %p44 = scmp.eq.s32.totalorder %s22, 1
      %p45 = por %p43, %p44
      %p47 = scmp.ne.s32.totalorder %s30, %s46
      %p48 = scmp.eq.s32.totalorder %s22, 0
      %p49 = por %p47, %p48
      %s51 = sadd.s32 %s50, 1
      %p54 = scmp.eq.s32.totalorder %s16, 1
      %p55 = scmp.ne.s32.totalorder %s50, %s52
      %p56 = scmp.eq.s32.totalorder %s16, 0
      %p57 = por %p55, %p56
      %p58 = scmp.ne.s32.totalorder %s50, %s52
      %p59 = scmp.eq.s32.totalorder %s21, 1
      %p60 = por %p58, %p59
      %p61 = scmp.ne.s32.totalorder %s52, %s53
      %p62 = scmp.eq.s32.totalorder %s21, 0
      %p63 = por %p61, %p62
      %p64 = scmp.ne.s32.totalorder %s52, %s53
      %p65 = scmp.eq.s32.totalorder %s22, 1
      %p66 = por %p64, %p65
      %p68 = scmp.ne.s32.totalorder %s53, %s67
      %p69 = scmp.eq.s32.totalorder %s22, 0
      %p70 = por %p68, %p69
      %s72 = sadd.s32 %s71, 1
      %p75 = scmp.eq.s32.totalorder %s16, 1
      %p76 = scmp.ne.s32.totalorder %s71, %s73
      %p77 = scmp.eq.s32.totalorder %s16, 0
      %p78 = por %p76, %p77
      %p79 = scmp.ne.s32.totalorder %s71, %s73
      %p80 = scmp.eq.s32.totalorder %s21, 1
      %p81 = por %p79, %p80
      %p82 = scmp.ne.s32.totalorder %s73, %s74
      %p83 = scmp.eq.s32.totalorder %s21, 0
      %p84 = por %p82, %p83
      %p85 = scmp.ne.s32.totalorder %s73, %s74
      %p86 = scmp.eq.s32.totalorder %s22, 1
      %p87 = por %p85, %p86
      %p89 = scmp.ne.s32.totalorder %s74, %s88
      %p90 = scmp.eq.s32.totalorder %s22, 0
      %p91 = por %p89, %p90
      %s92 = ssub.s32 %s16, %s23
      %p93 = scmp.eq.s32.totalorder %s92, 0
      %s95 = sadd.s32 %s94, 1
      %s96 = scalar_select %p93, %s94, %s95
      %p99 = pneg %p93
      %p100 = scmp.eq.s32.totalorder %s16, 1
      %p101 = por %p99, %p100
      %p102 = scmp.ne.s32.totalorder %s94, %s97
      %p103 = scmp.eq.s32.totalorder %s16, 0
      %p104 = por %p102, %p103
      %p105 = scmp.ne.s32.totalorder %s94, %s97
      %p106 = scmp.eq.s32.totalorder %s21, 1
      %p107 = por %p105, %p106
      %p108 = scmp.ne.s32.totalorder %s97, %s98
      %p109 = scmp.eq.s32.totalorder %s21, 0
      %p110 = por %p108, %p109
      %p111 = scmp.ne.s32.totalorder %s97, %s98
      %p112 = scmp.eq.s32.totalorder %s22, 1
      %p113 = por %p111, %p112
      %p115 = scmp.ne.s32.totalorder %s98, %s114
      %p116 = scmp.eq.s32.totalorder %s22, 0
      %p117 = por %p115, %p116
      %p118 = scmp.le.s32.totalorder 1, %s16
      %p119 = scmp.lt.s32.totalorder %s16, 3
      %p120 = pnand %p118, %p119
      %p121 = pneg %p120
      // Predicated region
      $region9: #{tpu_custom_call.1} parent=5 // pred_check
        _
      $region10: #{tpu_custom_call.1} parent=5 // pred_check_branch
        %123 = sbr.rel (%p120) target = $region12
      $region11: #{tpu_custom_call.1} parent=5 // pred_region
        %s124 = ssub.s32 %s16, 1
        // Predicated region
        $region13: #{tpu_custom_call.1} parent=11 // pred_check
          %p125 = pneg %p63
        $region14: #{tpu_custom_call.1} parent=11 // pred_check_branch
          %127 = sbr.rel (%p125) target = $region16
        $region15: #{tpu_custom_call.1} parent=11 // pred_region
          %129 = vsyncadd [#allocation6], 0
          %s130 = sshll.u32 %s1, 4
          %s131 = int_to_ptr.hbm [resolvable:$true] %s130
          %s132 = sshll.u32 [#allocation5], 4
          %s133 = int_to_ptr.vmem [resolvable:$true] %s132
          %138 = dma.hbm_to_vmem [thread:$0]  %s131, 512, %s133, [#allocation6], 128, 128, 8
        $region16: #{tpu_custom_call.1} parent=11 // pred_fallthru
          _
        // Predicated region
        $region17: #{tpu_custom_call.1} parent=11 // pred_check
          %p139 = pneg %p84
        $region18: #{tpu_custom_call.1} parent=11 // pred_check_branch
          %141 = sbr.rel (%p139) target = $region20
        $region19: #{tpu_custom_call.1} parent=11 // pred_region
          _
        $region20: #{tpu_custom_call.1} parent=11 // pred_fallthru
          _
      $region12: #{tpu_custom_call.1} parent=5 // pred_fallthru
        _
      %p142 = scmp.lt.s32.totalorder %s16, 2
      // Predicated region
      $region21: #{tpu_custom_call.1} parent=5 // pred_check
        %p143 = pneg %p142
      $region22: #{tpu_custom_call.1} parent=5 // pred_check_branch
        %145 = sbr.rel (%p143) target = $region24
      $region23: #{tpu_custom_call.1} parent=5 // pred_region
        // Predicated region
        $region25: #{tpu_custom_call.1} parent=23 // pred_check
          %p146 = pneg %p36
        $region26: #{tpu_custom_call.1} parent=23 // pred_check_branch
          %148 = sbr.rel (%p146) target = $region28
        $region27: #{tpu_custom_call.1} parent=23 // pred_region
          %s149 = sand.u32 %s26, 1
          %s150 = scalar_lea.sflag [#allocation3], %s149
          %s151 = sand.u32 %s26, 1
          %s152 = smul.addr %s151, 8
          %s153 = scalar_lea.vmem [#allocation2], %s152
          %155 = vsyncadd %s150, 0
          %s156 = smul.addr %s16, 8
          %s157 = scalar_lea.hbm %s0, %s156
          %s159 = sshll.u32 %s157, 4
          %s160 = int_to_ptr.hbm [resolvable:$true] %s159
          %s161 = sshll.u32 %s153, 4
          %s162 = int_to_ptr.vmem [resolvable:$true] %s161
          %164 = dma.hbm_to_vmem [thread:$0]  %s160, 128, %s162, %s150
        $region28: #{tpu_custom_call.1} parent=23 // pred_fallthru
          _
      $region24: #{tpu_custom_call.1} parent=5 // pred_fallthru
        _
      %p165 = scmp.le.s32.totalorder 1, %s16
      %p166 = scmp.lt.s32.totalorder %s16, 3
      %p167 = pnand %p165, %p166
      %p168 = pneg %p167
      // Predicated region
      $region29: #{tpu_custom_call.1} parent=5 // pred_check
        _
      $region30: #{tpu_custom_call.1} parent=5 // pred_check_branch
        %170 = sbr.rel (%p167) target = $region32
      $region31: #{tpu_custom_call.1} parent=5 // pred_region
        %s171 = ssub.s32 %s16, 1
        %s172 = sand.u32 %s29, 1
        %s173 = scalar_lea.sflag [#allocation3], %s172
        %s174 = sand.u32 %s29, 1
        %s175 = smul.addr %s174, 8
        %s176 = scalar_lea.vmem [#allocation2], %s175
        // Predicated region
        $region33: #{tpu_custom_call.1} parent=31 // pred_check
          %p177 = pneg %p42
        $region34: #{tpu_custom_call.1} parent=31 // pred_check_branch
          %179 = sbr.rel (%p177) target = $region36
        $region35: #{tpu_custom_call.1} parent=31 // pred_region
          %181 = dma.done %s173, 128
        $region36: #{tpu_custom_call.1} parent=31 // pred_fallthru
          _
        // Predicated region
        $region37: #{tpu_custom_call.1} parent=31 // pred_check
          %p182 = pneg %p63
        $region38: #{tpu_custom_call.1} parent=31 // pred_check_branch
          %184 = sbr.rel (%p182) target = $region40
        $region39: #{tpu_custom_call.1} parent=31 // pred_region
          %186 = dma.done [#allocation6], 512
        $region40: #{tpu_custom_call.1} parent=31 // pred_fallthru
          _
        %s187 = sand.u32 %s29, 1
        %s188 = scalar_lea.sflag [#allocation3], %s187
        %s189 = sand.u32 %s29, 1
        %s190 = smul.addr %s189, 8
        %s191 = scalar_lea.vmem [#allocation2], %s190
        %p192 = pneg %p42
        %p193 = pneg %p39
        %p194 = pneg %p63
        %p195 = pneg %p60
        %p196 = pneg %p84
        %p197 = pneg %p81
        %p198 = pneg %p110
        %p199 = pneg %p107
        %s200 = sand.u32 %s97, 1
        %s201 = scalar_lea.sflag [#allocation4], %s200
        %s202 = sand.u32 %s97, 1
        %s203 = smul.addr %s202, 8
        %s204 = scalar_lea.vmem [#allocation7], %s203
        %v205 = vld [vmem:[%s176] sm:$0xff]
        %v206 = vld [vmem:[#allocation5] sm:$0xff]
        %v207 = vld [vmem:[#allocation5 + $0x8] sm:$0xff]
        %v208 = vld [vmem:[#allocation5 + $0x10] sm:$0xff]
        %v209 = vld [vmem:[#allocation5 + $0x18] sm:$0xff]
        %v210 = vld [vmem:[%s2] sm:$0x1]
        %v212 = vperm.slane %v210, 0
        %vm214 = vcmask 261120
        %v216 = vsel %vm214, %v205, 0
        %218 = vmatpush.msra.mxu0 0.0
        %219 = vmatpush.msra.mxu0 0.0
        %220 = vmatpush.msra.mxu0 0.0
        %221 = vmatpush.msra.mxu0 0.0
        %222 = vmatpush.msra.mxu0 0.0
        %223 = vmatpush.msra.mxu0 0.0
        %224 = vmatpush.msra.mxu0 0.0
        %225 = vmatpush.msra.mxu0 0.0
        %226 = vmatpush.msra.mxu0 0.0
        %227 = vmatpush.msra.mxu0 0.0
        %228 = vmatpush.msra.mxu0 0.0
        %229 = vmatpush.msra.mxu0 0.0
        %230 = vmatpush.msra.mxu0 %v209
        %231 = vmatpush.msra.mxu0 %v208
        %232 = vmatpush.msra.mxu0 %v207
        %233 = vmatpush.msra.mxu0 %v206
        %234 = vmatmul.f32.gmra.mxu0 %v216
        %v235 = vpop.f32.mrf.mxu0
        %v236 = vadd.f32 %v212, %v235
        %237 = vdwg.mxu0
        %239 = vrot.lane.b32.xlu0 %v236, 96
        %v240 = vpop.permute.xlu0 %239
        %vm241 = vcmask 130048
        %v242 = vsel %vm241, %v236, 0
        %v244 = vsel %vm241, %v240, 0
        %246 = vmatpush.xpose.msra.mxu0 0.0
        %247 = vmatpush.xpose.msra.mxu0 0.0
        %248 = vmatpush.xpose.msra.mxu0 0.0
        %249 = vmatpush.xpose.msra.mxu0 0.0
        %250 = vmatpush.xpose.msra.mxu0 0.0
        %251 = vmatpush.xpose.msra.mxu0 0.0
        %252 = vmatpush.xpose.msra.mxu0 0.0
        %253 = vmatpush.xpose.msra.mxu0 0.0
        %254 = vmatpush.xpose.msra.mxu0 0.0
        %255 = vmatpush.xpose.msra.mxu0 0.0
        %256 = vmatpush.xpose.msra.mxu0 0.0
        %257 = vmatpush.xpose.msra.mxu0 0.0
        %258 = vmatpush.xpose.msra.mxu0 0.0
        %259 = vmatpush.xpose.msra.mxu0 0.0
        %260 = vmatpush.xpose.msra.mxu0 0.0
        %261 = vmatpush.xpose.msra.mxu0 %v244
        %262 = vmatmul.f32.gmra.mxu0 %v242
        %v263 = vpop.f32.mrf.mxu0
        %v264 = vadd.f32 0.0, %v263
        %265 = vdwg.mxu0
        %vm266 = vcmask 64512
        %v267 = vsel %vm266, %v264, -inf
        %268 = vmax.xlane.f32.xlu0 %v267
        %v269 = vpop.xlane.xlu0 %268
        %v270 = vsub.f32 %v264, %v269
        %v271 = vmul.f32 %v270, 1.442695
        %v272 = vpow.pop %v271
        %273 = vrot.lane.b32.xlu0 %v236, 64
        %v274 = vpop.permute.xlu0 %273
        %v277 = vsel %vm266, %v272, 0
        %279 = vmatpush.msra.mxu0 0.0
        %280 = vmatpush.msra.mxu0 0.0
        %281 = vmatpush.msra.mxu0 0.0
        %282 = vmatpush.msra.mxu0 0.0
        %283 = vmatpush.msra.mxu0 0.0
        %284 = vmatpush.msra.mxu0 0.0
        %285 = vmatpush.msra.mxu0 0.0
        %286 = vmatpush.msra.mxu0 0.0
        %287 = vmatpush.msra.mxu0 0.0
        %288 = vmatpush.msra.mxu0 0.0
        %289 = vmatpush.msra.mxu0 0.0
        %290 = vmatpush.msra.mxu0 0.0
        %291 = vmatpush.msra.mxu0 0.0
        %292 = vmatpush.msra.mxu0 0.0
        %293 = vmatpush.msra.mxu0 0.0
        %294 = vmatpush.msra.mxu0 %v274
        %295 = vmatmul.f32.gmra.mxu0 %v277
        %v296 = vpop.f32.mrf.mxu0
        %v297 = vadd.f32 0.0, %v296
        %298 = vdwg.mxu0
        %v299 = vsel %vm266, %v272, 0.0
        %300 = vadd.xlane.f32.xlu0 %v299
        %v301 = vpop.xlane.xlu0 %300
        %v302 = vrcp.pop %v301
        %v303 = vmul.f32 %v301, %v302
        %v304 = vsub.f32 1.0, %v303
        %v305 = vmul.f32 %v302, %v304
        %v306 = vadd.f32 %v302, %v305
        %vm307 = vweird.f32 %v301
        %vm308 = vweird.f32 %v302
        %vm309 = vmor %vm307, %vm308
        %v310 = vsel %vm309, %v302, %v306
        %v311 = vand.u32 2147483647, %v301
        %vm312 = vcmp.eq.f32.partialorder %v311, 8.507059e+37
        %v313 = vand.u32 %v301, 2147483648
        %v314 = vor.u32 1.1754944e-38, %v313
        %v315 = vsel %vm312, %v314, %v310
        %v316 = vmul.f32 %v297, %v315
        %317 = vrot.lane.b32.xlu0 %v236, 112
        %v318 = vpop.permute.xlu0 %317
        %319 = vrot.lane.b32.xlu0 %v236, 80
        %v320 = vpop.permute.xlu0 %319
        %v321 = vsel %vm241, %v318, 0
        %v323 = vsel %vm241, %v320, 0
        %325 = vmatpush.xpose.msra.mxu0 0.0
        %326 = vmatpush.xpose.msra.mxu0 0.0
        %327 = vmatpush.xpose.msra.mxu0 0.0
        %328 = vmatpush.xpose.msra.mxu0 0.0
        %329 = vmatpush.xpose.msra.mxu0 0.0
        %330 = vmatpush.xpose.msra.mxu0 0.0
        %331 = vmatpush.xpose.msra.mxu0 0.0
        %332 = vmatpush.xpose.msra.mxu0 0.0
        %333 = vmatpush.xpose.msra.mxu0 0.0
        %334 = vmatpush.xpose.msra.mxu0 0.0
        %335 = vmatpush.xpose.msra.mxu0 0.0
        %336 = vmatpush.xpose.msra.mxu0 0.0
        %337 = vmatpush.xpose.msra.mxu0 0.0
        %338 = vmatpush.xpose.msra.mxu0 0.0
        %339 = vmatpush.xpose.msra.mxu0 0.0
        %340 = vmatpush.xpose.msra.mxu0 %v323
        %341 = vmatmul.f32.gmra.mxu0 %v321
        %v342 = vpop.f32.mrf.mxu0
        %v343 = vadd.f32 0.0, %v342
        %344 = vdwg.mxu0
        %v345 = vsel %vm266, %v343, -inf
        %346 = vmax.xlane.f32.xlu0 %v345
        %v347 = vpop.xlane.xlu0 %346
        %v348 = vsub.f32 %v343, %v347
        %v349 = vmul.f32 %v348, 1.442695
        %v350 = vpow.pop %v349
        %351 = vrot.lane.b32.xlu0 %v236, 48
        %v352 = vpop.permute.xlu0 %351
        %v355 = vsel %vm266, %v350, 0
        %357 = vmatpush.msra.mxu0 0.0
        %358 = vmatpush.msra.mxu0 0.0
        %359 = vmatpush.msra.mxu0 0.0
        %360 = vmatpush.msra.mxu0 0.0
        %361 = vmatpush.msra.mxu0 0.0
        %362 = vmatpush.msra.mxu0 0.0
        %363 = vmatpush.msra.mxu0 0.0
        %364 = vmatpush.msra.mxu0 0.0
        %365 = vmatpush.msra.mxu0 0.0
        %366 = vmatpush.msra.mxu0 0.0
        %367 = vmatpush.msra.mxu0 0.0
        %368 = vmatpush.msra.mxu0 0.0
        %369 = vmatpush.msra.mxu0 0.0
        %370 = vmatpush.msra.mxu0 0.0
        %371 = vmatpush.msra.mxu0 0.0
        %372 = vmatpush.msra.mxu0 %v352
        %373 = vmatmul.f32.gmra.mxu0 %v355
        %v374 = vpop.f32.mrf.mxu0
        %v375 = vadd.f32 0.0, %v374
        %376 = vdwg.mxu0
        %v377 = vsel %vm266, %v350, 0.0
        %378 = vadd.xlane.f32.xlu0 %v377
        %v379 = vpop.xlane.xlu0 %378
        %v380 = vrcp.pop %v379
        %v381 = vmul.f32 %v379, %v380
        %v382 = vsub.f32 1.0, %v381
        %v383 = vmul.f32 %v380, %v382
        %v384 = vadd.f32 %v380, %v383
        %vm385 = vweird.f32 %v379
        %vm386 = vweird.f32 %v380
        %vm387 = vmor %vm385, %vm386
        %v388 = vsel %vm387, %v380, %v384
        %v389 = vand.u32 2147483647, %v379
        %vm390 = vcmp.eq.f32.partialorder %v389, 8.507059e+37
        %v391 = vand.u32 %v379, 2147483648
        %v392 = vor.u32 1.1754944e-38, %v391
        %v393 = vsel %vm390, %v392, %v388
        %v394 = vmul.f32 %v375, %v393
        %396 = vrot.lane.b32.xlu0 %v394, 16
        %v397 = vpop.permute.xlu0 %396
        %v399 = vsel %vm241, %v316, %v397
        %400 = vst.msk [vmem:[%s204] sm:$0xff] %vm214, %v399
        %s401 = sand.u32 %s97, 1
        %s402 = scalar_lea.sflag [#allocation4], %s401
        %s403 = sand.u32 %s97, 1
        %s404 = smul.addr %s403, 8
        %s405 = scalar_lea.vmem [#allocation7], %s404
        // Predicated region
        $region41: #{tpu_custom_call.1} parent=31 // pred_check
          %p406 = pneg %p107
        $region42: #{tpu_custom_call.1} parent=31 // pred_check_branch
          %408 = sbr.rel (%p406) target = $region44
        $region43: #{tpu_custom_call.1} parent=31 // pred_region
          %410 = vsyncadd %s402, 0
          %s411 = smul.addr %s21, 8
          %s412 = scalar_lea.hbm %s3, %s411
          %s414 = sshll.u32 %s405, 4
          %s415 = int_to_ptr.vmem [resolvable:$true] %s414
          %s416 = sshll.u32 %s412, 4
          %s417 = int_to_ptr.hbm [resolvable:$true] %s416
          %419 = dma.vmem_to_hbm [thread:$0]  %s415, 128, %s417, %s402
        $region44: #{tpu_custom_call.1} parent=31 // pred_fallthru
          _
      $region32: #{tpu_custom_call.1} parent=5 // pred_fallthru
        _
      %p420 = scmp.le.s32.totalorder 2, %s16
      // Predicated region
      $region45: #{tpu_custom_call.1} parent=5 // pred_check
        %p421 = pneg %p420
      $region46: #{tpu_custom_call.1} parent=5 // pred_check_branch
        %423 = sbr.rel (%p421) target = $region48
      $region47: #{tpu_custom_call.1} parent=5 // pred_region
        %s424 = ssub.s32 %s16, 2
        // Predicated region
        $region49: #{tpu_custom_call.1} parent=47 // pred_check
          %p425 = pneg %p113
        $region50: #{tpu_custom_call.1} parent=47 // pred_check_branch
          %427 = sbr.rel (%p425) target = $region52
        $region51: #{tpu_custom_call.1} parent=47 // pred_region
          %s428 = sand.u32 %s98, 1
          %s429 = scalar_lea.sflag [#allocation4], %s428
          %s430 = sand.u32 %s98, 1
          %s431 = smul.addr %s430, 8
          %s432 = scalar_lea.vmem [#allocation7], %s431
          %434 = dma.done %s429, 128
        $region52: #{tpu_custom_call.1} parent=47 // pred_fallthru
          _
      $region48: #{tpu_custom_call.1} parent=5 // pred_fallthru
        _
    $region6: #{tpu_custom_call.1} parent=1 // loop_footer
      %s20 = sadd.s32 1, %s16
    $region7: #{tpu_custom_call.1} parent=1 // loop_footer_branch
      %15 = sbr.rel target = $region3
    $region8: #{tpu_custom_call.1} parent=1 // loop_exit
      _
    %435 = vsyncpa [#allocation3], 1
    %s436 = scalar_lea.sflag [#allocation3], 1
    %437 = vsyncpa %s436, 1
    %438 = vsyncpa [#allocation6], 1
    %439 = vsyncpa [#allocation4], 1
    %s440 = scalar_lea.sflag [#allocation4], 1
    %441 = vsyncpa %s440, 1

</llo_original>
